<compile_context>
chip_gen: v6e
topology: v6e:2x2x1
jax: 0.10.0
libtpu: 0.0.40
codegen_flags: <defaults>
</compile_context>

<pallas_src>
import jax
import jax.numpy as jnp
from jax.experimental import pallas as pl
from jax.experimental.pallas import tpu as pltpu


# --------------------------------------------------------------------------
# Kernels
# --------------------------------------------------------------------------
def _residual_block_kernel(x_ref, w1t_ref, w2t_ref, o_ref):
    """Both (C, C) weights fully VMEM-resident; one row tile per grid step."""
    x = x_ref[...]                                   # (tile_n, C), bf16 or f32
    xm = x if x.dtype == w1t_ref.dtype else x.astype(w1t_ref.dtype)
    # Linear 1 (bias=False) + ReLU; MXU bf16 operands, f32 accumulation.
    h = jnp.maximum(
        jnp.dot(xm, w1t_ref[...], preferred_element_type=jnp.float32), 0.0)
    # Linear 2 (bias=False) + ReLU.
    t = jnp.maximum(
        jnp.dot(h.astype(w2t_ref.dtype), w2t_ref[...],
                preferred_element_type=jnp.float32), 0.0)
    # Residual add in f32, single cast on the way out.
    o_ref[...] = (x.astype(jnp.float32) + t).astype(o_ref.dtype)


def _residual_block_kernel_kchunk(x_ref, w1t_ref, w2t_ref, o_ref, acc_ref):
    """Hidden-dim chunked path for large C.

    Grid = (row_tiles, hidden_chunks); the hidden axis is a reduction
    ("arbitrary", last).  Per chunk j:
        acc += relu(x @ W1^T[:, j]) @ W2^T[j, :]
    Valid because the first ReLU is elementwise per hidden column.
    """
    j = pl.program_id(1)

    @pl.when(j == 0)
    def _init():
        acc_ref[...] = jnp.zeros_like(acc_ref)

    x = x_ref[...]
    xm = x if x.dtype == w1t_ref.dtype else x.astype(w1t_ref.dtype)
    h = jnp.maximum(
        jnp.dot(xm, w1t_ref[...], preferred_element_type=jnp.float32), 0.0)
    acc_ref[...] += jnp.dot(h.astype(w2t_ref.dtype), w2t_ref[...],
                            preferred_element_type=jnp.float32)

    @pl.when(j == pl.num_programs(1) - 1)
    def _finalize():
        t = jnp.maximum(acc_ref[...], 0.0)
        o_ref[...] = (x.astype(jnp.float32) + t).astype(o_ref.dtype)


# --------------------------------------------------------------------------
# Wrapper
# --------------------------------------------------------------------------
def make_residual_block_params(w1, w2, compute_dtype=jnp.bfloat16):
    """One-time init work: transpose (nn.Linear stores (out, in)) and cast the
    weights to the MXU compute dtype so the per-forward call pays no HBM
    transpose/cast pass."""
    return (jnp.asarray(w1).T.astype(compute_dtype),
            jnp.asarray(w2).T.astype(compute_dtype))


def _round_up(v, m):
    return ((v + m - 1) // m) * m


def _vmem_capacity_bytes():
    try:
        cap = getattr(pltpu.get_tpu_info(), "vmem_capacity_bytes", None)
        if cap:
            return int(cap)
    except Exception:
        pass
    return 64 << 20  # conservative: v7x per-TensorCore VMEM


def residual_block(x, w1t, w2t, *, tile_n=None, c_chunk=None,
                   vmem_limit_bytes=None, out_dtype=None):
    """x: (N, C).  w1t, w2t: (C, C) already transposed to (in, out) layout and
    cast to the MXU compute dtype (see make_residual_block_params).
    Output dtype defaults to x.dtype (use bf16 x/out for bandwidth-bound
    shapes; math inside the kernel is f32 regardless)."""
    N, C = x.shape
    assert w1t.shape == (C, C) and w2t.shape == (C, C)
    out_dtype = x.dtype if out_dtype is None else out_dtype

    x_b = jnp.dtype(x.dtype).itemsize
    o_b = jnp.dtype(out_dtype).itemsize
    w_b = jnp.dtype(w1t.dtype).itemsize

    cap = _vmem_capacity_bytes()
    budget = int(cap * 0.7)                       # headroom below physical VMEM

    def step_vmem(tn, ck):
        io = 2 * tn * C * (x_b + o_b)             # double-buffered x / out tiles
        wts = 4 * C * ck * w_b                    # 2 weights x 2 pipeline buffers
        tmp = tn * C * 4 + tn * ck * 4            # f32 accumulator + layer-1 act
        return io + wts + tmp

    # ---- hidden-dim chunk: keep weight blocks comfortably inside VMEM ------
    if c_chunk is None:
        c_chunk = C
        while 4 * C * c_chunk * w_b > budget // 2 and c_chunk % 256 == 0:
            c_chunk //= 2
    assert C % c_chunk == 0 and (c_chunk == C or c_chunk % 128 == 0), \
        "c_chunk must divide C and be a multiple of 128"
    use_kchunk = c_chunk < C

    # ---- row tile: as large as VMEM allows (amortizes ~0.35us/step) --------
    if tile_n is None:
        tile_n = min(N, 256)
        for cand in (512, 1024, 2048):
            if cand <= N and step_vmem(cand, c_chunk) <= budget:
                tile_n = cand
        # v7x has 2 TensorCores: give the (parallel) row axis >= 2 grid steps
        # when there is enough work; harmless on single-TC v5e/v6e.
        if tile_n >= N and N >= 256:
            tile_n = max(128, _round_up(pl.cdiv(N, 2), 128))
    tile_n = min(tile_n, N)

    if vmem_limit_bytes is None:
        vmem_limit_bytes = max(int(step_vmem(tile_n, c_chunk) * 1.5), 16 << 20)
    # Never request more than the hardware can physically provide.
    vmem_limit_bytes = int(min(vmem_limit_bytes, cap * 0.85))

    cost = pl.CostEstimate(
        flops=4 * N * C * C,                      # two (N,C)@(C,C) matmuls
        transcendentals=0,
        bytes_accessed=N * C * (x_b + o_b) + 2 * C * C * w_b,
    )

    if not use_kchunk:
        call = pl.pallas_call(
            _residual_block_kernel,
            out_shape=jax.ShapeDtypeStruct((N, C), out_dtype),
            grid_spec=pltpu.PrefetchScalarGridSpec(
                num_scalar_prefetch=0,
                grid=(pl.cdiv(N, tile_n),),
                in_specs=[
                    pl.BlockSpec((tile_n, C), lambda i: (i, 0)),  # x row tile
                    pl.BlockSpec((C, C), lambda i: (0, 0)),       # W1^T resident
                    pl.BlockSpec((C, C), lambda i: (0, 0)),       # W2^T resident
                ],
                out_specs=pl.BlockSpec((tile_n, C), lambda i: (i, 0)),
            ),
            compiler_params=pltpu.CompilerParams(
                dimension_semantics=("parallel",),
                vmem_limit_bytes=vmem_limit_bytes),
            cost_estimate=cost,
        )
        return call(x, w1t, w2t)

    # Hidden-dim chunked path (large C): reduction axis last, f32 accumulator.
    call = pl.pallas_call(
        _residual_block_kernel_kchunk,
        out_shape=jax.ShapeDtypeStruct((N, C), out_dtype),
        grid_spec=pltpu.PrefetchScalarGridSpec(
            num_scalar_prefetch=0,
            grid=(pl.cdiv(N, tile_n), C // c_chunk),
            in_specs=[
                pl.BlockSpec((tile_n, C), lambda i, j: (i, 0)),    # x row tile
                pl.BlockSpec((C, c_chunk), lambda i, j: (0, j)),   # W1^T cols
                pl.BlockSpec((c_chunk, C), lambda i, j: (j, 0)),   # W2^T rows
            ],
            out_specs=pl.BlockSpec((tile_n, C), lambda i, j: (i, 0)),
            scratch_shapes=[pltpu.VMEM((tile_n, C), jnp.float32)],
        ),
        compiler_params=pltpu.CompilerParams(
            dimension_semantics=("parallel", "arbitrary"),
            vmem_limit_bytes=vmem_limit_bytes),
        cost_estimate=cost,
    )
    return call(x, w1t, w2t)


def residual_block_ref(x, w1t, w2t):
    """Pure-JAX reference matching the kernel's exact cast points."""
    xm = x.astype(w1t.dtype)
    h = jnp.maximum(jnp.dot(xm, w1t, preferred_element_type=jnp.float32), 0.0)
    t = jnp.maximum(jnp.dot(h.astype(w2t.dtype), w2t,
                            preferred_element_type=jnp.float32), 0.0)
    return x.astype(jnp.float32) + t


# --------------------------------------------------------------------------
# Demo / self-test
# --------------------------------------------------------------------------
if __name__ == "__main__":
    nChn = 256      # small stand-in for the module default of 512
    N = 1024        # rows; gives a 2-step row grid (both v7x cores get work)

    key = jax.random.PRNGKey(0)
    kx, k1, k2 = jax.random.split(key, 3)
    x_f32 = jax.random.normal(kx, (N, nChn), dtype=jnp.float32)
    # deterministic synthetic weights (kaiming-ish scale), nn.Linear (out, in)
    scale = 1.0 / jnp.sqrt(nChn)
    w1 = jax.random.normal(k1, (nChn, nChn), dtype=jnp.float32) * scale
    w2 = jax.random.normal(k2, (nChn, nChn), dtype=jnp.float32) * scale

    # one-time "init" work: transpose + bf16 cast of the weights
    w1t, w2t = make_residual_block_params(w1, w2, compute_dtype=jnp.bfloat16)

    # bf16 HBM I/O (mem-bound kernel => halves x/out DMA bytes); f32 math inside.
    x = x_f32.astype(jnp.bfloat16)

    out = jax.block_until_ready(residual_block(x, w1t, w2t))
    assert out.shape == (N, nChn) and out.dtype == jnp.bfloat16

    # tight check vs a reference using identical bf16 operands / f32 accumulation
    ref = residual_block_ref(x, w1t, w2t).astype(jnp.bfloat16).astype(jnp.float32)
    assert jnp.allclose(out.astype(jnp.float32), ref, atol=5e-2, rtol=5e-2), \
        "mismatch vs mixed-precision reference"

    # exercise the hidden-dim chunked (large-C) path at this small size too
    out_k = jax.block_until_ready(residual_block(x, w1t, w2t, c_chunk=128))
    assert jnp.allclose(out_k.astype(jnp.float32), out.astype(jnp.float32),
                        atol=5e-2, rtol=5e-2), "k-chunk path mismatch"

    # loose sanity check vs the full-f32 PyTorch semantics
    ref_f32 = x_f32 + jnp.maximum(jnp.maximum(x_f32 @ w1.T, 0.0) @ w2.T, 0.0)
    assert jnp.allclose(out.astype(jnp.float32), ref_f32, atol=5e-1, rtol=1e-1), \
        "mismatch vs f32 reference"

    print("KERNEL_OK")
</pallas_src>

<mosaic_0001>
module attributes {stable_mosaic.version = 11 : i64} {
  func.func @_residual_block_kernel(%arg0: i32, %arg1: memref<512x256xbf16, #tpu.memory_space<vmem>>, %arg2: memref<256x256xbf16, #tpu.memory_space<vmem>>, %arg3: memref<256x256xbf16, #tpu.memory_space<vmem>>, %arg4: memref<512x256xbf16, #tpu.memory_space<vmem>>) attributes {dimension_semantics = [#tpu.dimension_semantics<parallel>], iteration_bounds = array<i64: 2>, scalar_prefetch = 0 : i64, scratch_operands = 0 : i64, tpu.core_type = #tpu.core_type<tc>, window_params = [{transform_indices = @transform_0, window_bounds = array<i64: 512, 256>}, {pipeline_mode = #tpu.pipeline_mode<synchronous>, transform_indices = @transform_1, window_bounds = array<i64: 256, 256>}, {pipeline_mode = #tpu.pipeline_mode<synchronous>, transform_indices = @transform_2, window_bounds = array<i64: 256, 256>}, {transform_indices = @transform_3, window_bounds = array<i64: 512, 256>}]} {
    %c0 = arith.constant 0 : index
    %c0_0 = arith.constant 0 : index
    %0 = vector.load %arg1[%c0, %c0_0] : memref<512x256xbf16, #tpu.memory_space<vmem>>, vector<512x256xbf16>
    %c0_1 = arith.constant 0 : index
    %c0_2 = arith.constant 0 : index
    %1 = vector.load %arg2[%c0_1, %c0_2] : memref<256x256xbf16, #tpu.memory_space<vmem>>, vector<256x256xbf16>
    %cst = arith.constant dense<0.000000e+00> : vector<512x256xf32>
    %2 = tpu.matmul %0, %1, %cst {dimension_numbers = #tpu.dot_dimension_numbers<[1], [0], [0], [1], [0, 0, 1, 1], [], []>} : vector<512x256xbf16>, vector<256x256xbf16>, vector<512x256xf32> -> vector<512x256xf32>
    %cst_3 = arith.constant 0.000000e+00 : f32
    %3 = vector.broadcast %cst_3 : f32 to vector<512x256xf32>
    %4 = arith.maximumf %2, %3 : vector<512x256xf32>
    %5 = arith.truncf %4 : vector<512x256xf32> to vector<512x256xbf16>
    %c0_4 = arith.constant 0 : index
    %c0_5 = arith.constant 0 : index
    %6 = vector.load %arg3[%c0_4, %c0_5] : memref<256x256xbf16, #tpu.memory_space<vmem>>, vector<256x256xbf16>
    %cst_6 = arith.constant dense<0.000000e+00> : vector<512x256xf32>
    %7 = tpu.matmul %5, %6, %cst_6 {dimension_numbers = #tpu.dot_dimension_numbers<[1], [0], [0], [1], [0, 0, 1, 1], [], []>} : vector<512x256xbf16>, vector<256x256xbf16>, vector<512x256xf32> -> vector<512x256xf32>
    %cst_7 = arith.constant 0.000000e+00 : f32
    %8 = vector.broadcast %cst_7 : f32 to vector<512x256xf32>
    %9 = arith.maximumf %7, %8 : vector<512x256xf32>
    %10 = arith.extf %0 : vector<512x256xbf16> to vector<512x256xf32>
    %11 = arith.addf %10, %9 : vector<512x256xf32>
    %12 = arith.truncf %11 : vector<512x256xf32> to vector<512x256xbf16>
    %c0_8 = arith.constant 0 : index
    %c0_9 = arith.constant 0 : index
    %13 = vector.load %arg4[%c0_8, %c0_9] : memref<512x256xbf16, #tpu.memory_space<vmem>>, vector<512x256xbf16>
    tpu.vector_store %arg4[%c0_8, %c0_9], %12 {strides = array<i32>} : memref<512x256xbf16, #tpu.memory_space<vmem>>, vector<512x256xbf16>,
    return
  }
  func.func @transform_0(%arg0: i32) -> (i32, i32) {
    %c0_i32 = arith.constant 0 : i32
    %c0_i32_0 = arith.constant 0 : i32
    return %arg0, %c0_i32 : i32, i32
  }
  func.func @transform_1(%arg0: i32) -> (i32, i32) {
    %c0_i32 = arith.constant 0 : i32
    %c0_i32_0 = arith.constant 0 : i32
    %c0_i32_1 = arith.constant 0 : i32
    return %c0_i32, %c0_i32_0 : i32, i32
  }
  func.func @transform_2(%arg0: i32) -> (i32, i32) {
    %c0_i32 = arith.constant 0 : i32
    %c0_i32_0 = arith.constant 0 : i32
    %c0_i32_1 = arith.constant 0 : i32
    return %c0_i32, %c0_i32_0 : i32, i32
  }
  func.func @transform_3(%arg0: i32) -> (i32, i32) {
    %c0_i32 = arith.constant 0 : i32
    %c0_i32_0 = arith.constant 0 : i32
    return %arg0, %c0_i32 : i32, i32
  }
}

</mosaic_0001>

<llo_original>
// kernel: tpu_custom_call.1
$region0: #{tpu_custom_call.1}
  #allocation0 [shape = 'u32[]', space=smem, size = 0x4, offset = 0x4, fixed_abs, tag = 'smem constant byte address 0x4 - core index']
  #allocation1 [shape = 'u32[144,128]{1,0:T(1,128)}', space=vmem, size = 0x12000, scoped, tag = 'internal scratch']
  %s0 = inlined_call_operand.hbm [shape: bf16[1024,256], index: 0, kind: input, shape index: {}]
  %s1 = inlined_call_operand.hbm [shape: bf16[256,256], index: 1, kind: input, shape index: {}]
  %s2 = inlined_call_operand.hbm [shape: bf16[256,256], index: 2, kind: input, shape index: {}]
  %s3 = inlined_call_operand.hbm [shape: bf16[1024,256], index: 3, kind: output, shape index: {}]
  %s4 = sld [smem:[#allocation0]]
  $region57: #{tpu_custom_call.1} parent=0
    _
  %s6 = ssub.s32 1, %s4
  %s7 = scalar_select 0, %s6, %s4
  $region1: #{tpu_custom_call.1} parent=0
    #allocation2 [shape = 'u8[524288]{0}', space=vmem, size = 0x80000, scoped, tag = 'input window, operand 0']
    #allocation3 [shape = 's32[2]{0}', space=sflag, size = 0x8, scoped, tag = 'scoped memory for tpu_custom_call.1']
    #allocation4 [shape = 's32[2]{0}', space=sflag, size = 0x8, scoped, tag = 'scoped memory for tpu_custom_call.1']
    #allocation5 [shape = 'u8[131072]{0}', space=vmem, size = 0x20000, scoped, tag = 'input window, operand 1, single buffered']
    #allocation6 [shape = 's32[1]{0}', space=sflag, size = 0x4, scoped, tag = 'scoped memory for tpu_custom_call.1']
    #allocation7 [shape = 'u8[131072]{0}', space=vmem, size = 0x20000, scoped, tag = 'input window, operand 2, single buffered']
    #allocation8 [shape = 'u8[524288]{0}', space=vmem, size = 0x80000, scoped, tag = 'output window, operand 0']
    %8 = vsyncpa [#allocation3], 0
    %s9 = scalar_lea.sflag [#allocation3], 1
    %10 = vsyncpa %s9, 0
    %11 = vsyncpa [#allocation6], 0
    %12 = vsyncpa [#allocation4], 0
    %s13 = scalar_lea.sflag [#allocation4], 1
    %14 = vsyncpa %s13, 0
    loop: start=0, step=1, limit=4
    $region2: #{tpu_custom_call.1} parent=1 // loop_pre_header
      _
    $region3: #{tpu_custom_call.1} parent=1 // loop_header
      %s16 = sphi 0, %s20
      %p17 = scmp.ge.s32.totalorder %s16, 4
      %s26 = sphi 0, %s28
      %s29 = sphi 0, %s26
      %s30 = sphi 0, %s29
      %s46 = sphi 0, %s30
      %s50 = sphi 0, %s50
      %s52 = sphi 0, %s50
      %s53 = sphi 0, %s52
      %s67 = sphi 0, %s53
      %s71 = sphi 0, %s71
      %s73 = sphi 0, %s71
      %s74 = sphi 0, %s73
      %s88 = sphi 0, %s74
      %s94 = sphi 0, %s96
      %s97 = sphi 0, %s94
      %s98 = sphi 0, %s97
      %s114 = sphi 0, %s98
    $region4: #{tpu_custom_call.1} parent=1 // loop_header_branch
      %19 = sbr.rel (%p17) target = $region8
    $region5: #{tpu_custom_call.1} parent=1 // loop_body
      %s21 = ssub.s32 %s16, 1
      %s22 = ssub.s32 %s16, 2
      %s23 = sadd.s32 %s16, 1
      %s24 = ssub.s32 %s16, %s23
      %p25 = scmp.eq.s32.totalorder %s24, 0
      %s27 = sadd.s32 %s26, 1
      %s28 = scalar_select %p25, %s26, %s27
      %p31 = pneg %p25
      %p32 = scmp.eq.s32.totalorder %s16, 1
      %p33 = por %p31, %p32
      %p34 = scmp.ne.s32.totalorder %s26, %s29
      %p35 = scmp.eq.s32.totalorder %s16, 0
      %p36 = por %p34, %p35
      %p37 = scmp.ne.s32.totalorder %s26, %s29
      %p38 = scmp.eq.s32.totalorder %s21, 1
      %p39 = por %p37, %p38
      %p40 = scmp.ne.s32.totalorder %s29, %s30
      %p41 = scmp.eq.s32.totalorder %s21, 0
      %p42 = por %p40, %p41
      %p43 = scmp.ne.s32.totalorder %s29, %s30
      %p44 = scmp.eq.s32.totalorder %s22, 1
      %p45 = por %p43, %p44
      %p47 = scmp.ne.s32.totalorder %s30, %s46
      %p48 = scmp.eq.s32.totalorder %s22, 0
      %p49 = por %p47, %p48
      %s51 = sadd.s32 %s50, 1
      %p54 = scmp.eq.s32.totalorder %s16, 1
      %p55 = scmp.ne.s32.totalorder %s50, %s52
      %p56 = scmp.eq.s32.totalorder %s16, 0
      %p57 = por %p55, %p56
      %p58 = scmp.ne.s32.totalorder %s50, %s52
      %p59 = scmp.eq.s32.totalorder %s21, 1
      %p60 = por %p58, %p59
      %p61 = scmp.ne.s32.totalorder %s52, %s53
      %p62 = scmp.eq.s32.totalorder %s21, 0
      %p63 = por %p61, %p62
      %p64 = scmp.ne.s32.totalorder %s52, %s53
      %p65 = scmp.eq.s32.totalorder %s22, 1
      %p66 = por %p64, %p65
      %p68 = scmp.ne.s32.totalorder %s53, %s67
      %p69 = scmp.eq.s32.totalorder %s22, 0
      %p70 = por %p68, %p69
      %s72 = sadd.s32 %s71, 1
      %p75 = scmp.eq.s32.totalorder %s16, 1
      %p76 = scmp.ne.s32.totalorder %s71, %s73
      %p77 = scmp.eq.s32.totalorder %s16, 0
      %p78 = por %p76, %p77
      %p79 = scmp.ne.s32.totalorder %s71, %s73
      %p80 = scmp.eq.s32.totalorder %s21, 1
      %p81 = por %p79, %p80
      %p82 = scmp.ne.s32.totalorder %s73, %s74
      %p83 = scmp.eq.s32.totalorder %s21, 0
      %p84 = por %p82, %p83
      %p85 = scmp.ne.s32.totalorder %s73, %s74
      %p86 = scmp.eq.s32.totalorder %s22, 1
      %p87 = por %p85, %p86
      %p89 = scmp.ne.s32.totalorder %s74, %s88
      %p90 = scmp.eq.s32.totalorder %s22, 0
      %p91 = por %p89, %p90
      %s92 = ssub.s32 %s16, %s23
      %p93 = scmp.eq.s32.totalorder %s92, 0
      %s95 = sadd.s32 %s94, 1
      %s96 = scalar_select %p93, %s94, %s95
      %p99 = pneg %p93
      %p100 = scmp.eq.s32.totalorder %s16, 1
      %p101 = por %p99, %p100
      %p102 = scmp.ne.s32.totalorder %s94, %s97
      %p103 = scmp.eq.s32.totalorder %s16, 0
      %p104 = por %p102, %p103
      %p105 = scmp.ne.s32.totalorder %s94, %s97
      %p106 = scmp.eq.s32.totalorder %s21, 1
      %p107 = por %p105, %p106
      %p108 = scmp.ne.s32.totalorder %s97, %s98
      %p109 = scmp.eq.s32.totalorder %s21, 0
      %p110 = por %p108, %p109
      %p111 = scmp.ne.s32.totalorder %s97, %s98
      %p112 = scmp.eq.s32.totalorder %s22, 1
      %p113 = por %p111, %p112
      %p115 = scmp.ne.s32.totalorder %s98, %s114
      %p116 = scmp.eq.s32.totalorder %s22, 0
      %p117 = por %p115, %p116
      %p118 = scmp.le.s32.totalorder 1, %s16
      %p119 = scmp.lt.s32.totalorder %s16, 3
      %p120 = pnand %p118, %p119
      %p121 = pneg %p120
      // Predicated region
      $region9: #{tpu_custom_call.1} parent=5 // pred_check
        _
      $region10: #{tpu_custom_call.1} parent=5 // pred_check_branch
        %123 = sbr.rel (%p120) target = $region12
      $region11: #{tpu_custom_call.1} parent=5 // pred_region
        %s124 = ssub.s32 %s16, 1
        // Predicated region
        $region13: #{tpu_custom_call.1} parent=11 // pred_check
          %p125 = pneg %p63
        $region14: #{tpu_custom_call.1} parent=11 // pred_check_branch
          %127 = sbr.rel (%p125) target = $region16
        $region15: #{tpu_custom_call.1} parent=11 // pred_region
          %s129 = ssub.s32 4096, 4096
          %130 = vsyncadd [#allocation6], %s129
          %s131 = sshll.u32 [#allocation5], 4
          %s132 = int_to_ptr.vmem [resolvable:$true] %s131
          %137 = dma.hbm_to_vmem [thread:$0]  %s1, 4096, %s132, [#allocation6], 128, 128, 8
        $region16: #{tpu_custom_call.1} parent=11 // pred_fallthru
          _
        // Predicated region
        $region17: #{tpu_custom_call.1} parent=11 // pred_check
          %p138 = pneg %p84
        $region18: #{tpu_custom_call.1} parent=11 // pred_check_branch
          %140 = sbr.rel (%p138) target = $region20
        $region19: #{tpu_custom_call.1} parent=11 // pred_region
          %s142 = ssub.s32 4096, 4096
          %143 = vsyncadd [#allocation6], %s142
          %s144 = sshll.u32 [#allocation7], 4
          %s145 = int_to_ptr.vmem [resolvable:$true] %s144
          %150 = dma.hbm_to_vmem [thread:$0]  %s2, 4096, %s145, [#allocation6], 128, 128, 8
        $region20: #{tpu_custom_call.1} parent=11 // pred_fallthru
          _
      $region12: #{tpu_custom_call.1} parent=5 // pred_fallthru
        _
      %p151 = scmp.lt.s32.totalorder %s16, 2
      // Predicated region
      $region21: #{tpu_custom_call.1} parent=5 // pred_check
        %p152 = pneg %p151
      $region22: #{tpu_custom_call.1} parent=5 // pred_check_branch
        %154 = sbr.rel (%p152) target = $region24
      $region23: #{tpu_custom_call.1} parent=5 // pred_region
        // Predicated region
        $region25: #{tpu_custom_call.1} parent=23 // pred_check
          %p155 = pneg %p36
        $region26: #{tpu_custom_call.1} parent=23 // pred_check_branch
          %157 = sbr.rel (%p155) target = $region28
        $region27: #{tpu_custom_call.1} parent=23 // pred_region
          %s158 = sand.u32 %s26, 1
          %s159 = scalar_lea.sflag [#allocation3], %s158
          %s160 = sand.u32 %s26, 1
          %s161 = smul.addr %s160, 512
          %s162 = scalar_lea.vmem [#allocation2], %s161
          %s163 = smul.u32 64, %s16
          %s165 = ssub.s32 8192, 8192
          %166 = vsyncadd %s159, %s165
          %s167 = smul.addr %s163, 2
          %s168 = smul.addr %s167, 64
          %s169 = scalar_lea.hbm %s0, %s168
          %s170 = sshll.u32 %s162, 4
          %s171 = int_to_ptr.vmem [resolvable:$true] %s170
          %176 = dma.hbm_to_vmem [thread:$0]  %s169, 8192, %s171, %s159, 128, 128, 8
        $region28: #{tpu_custom_call.1} parent=23 // pred_fallthru
          _
      $region24: #{tpu_custom_call.1} parent=5 // pred_fallthru
        _
      %p177 = scmp.le.s32.totalorder 1, %s16
      %p178 = scmp.lt.s32.totalorder %s16, 3
      %p179 = pnand %p177, %p178
      %p180 = pneg %p179
      // Predicated region
      $region29: #{tpu_custom_call.1} parent=5 // pred_check
        _
      $region30: #{tpu_custom_call.1} parent=5 // pred_check_branch
        %182 = sbr.rel (%p179) target = $region32
      $region31: #{tpu_custom_call.1} parent=5 // pred_region
        %s183 = ssub.s32 %s16, 1
        %s184 = sand.u32 %s29, 1
        %s185 = scalar_lea.sflag [#allocation3], %s184
        %s186 = sand.u32 %s29, 1
        %s187 = smul.addr %s186, 512
        %s188 = scalar_lea.vmem [#allocation2], %s187
        // Predicated region
        $region33: #{tpu_custom_call.1} parent=31 // pred_check
          %p189 = pneg %p42
        $region34: #{tpu_custom_call.1} parent=31 // pred_check_branch
          %191 = sbr.rel (%p189) target = $region36
        $region35: #{tpu_custom_call.1} parent=31 // pred_region
          %192 = dma.done %s185, 8192
        $region36: #{tpu_custom_call.1} parent=31 // pred_fallthru
          _
        // Predicated region
        $region37: #{tpu_custom_call.1} parent=31 // pred_check
          %p193 = pneg %p63
        $region38: #{tpu_custom_call.1} parent=31 // pred_check_branch
          %195 = sbr.rel (%p193) target = $region40
        $region39: #{tpu_custom_call.1} parent=31 // pred_region
          %196 = dma.done [#allocation6], 4096
        $region40: #{tpu_custom_call.1} parent=31 // pred_fallthru
          _
        // Predicated region
        $region41: #{tpu_custom_call.1} parent=31 // pred_check
          %p197 = pneg %p84
        $region42: #{tpu_custom_call.1} parent=31 // pred_check_branch
          %199 = sbr.rel (%p197) target = $region44
        $region43: #{tpu_custom_call.1} parent=31 // pred_region
          %200 = dma.done [#allocation6], 4096
        $region44: #{tpu_custom_call.1} parent=31 // pred_fallthru
          _
        %s201 = sand.u32 %s29, 1
        %s202 = scalar_lea.sflag [#allocation3], %s201
        %s203 = sand.u32 %s29, 1
        %s204 = smul.addr %s203, 512
        %s205 = scalar_lea.vmem [#allocation2], %s204
        %p206 = pneg %p42
        %p207 = pneg %p39
        %p208 = pneg %p63
        %p209 = pneg %p60
        %p210 = pneg %p84
        %p211 = pneg %p81
        %p212 = pneg %p110
        %p213 = pneg %p107
        %s214 = sand.u32 %s97, 1
        %s215 = scalar_lea.sflag [#allocation4], %s214
        %s216 = sand.u32 %s97, 1
        %s217 = smul.addr %s216, 512
        %s218 = scalar_lea.vmem [#allocation8], %s217
        %s219 = smul.u32 64, %s21
        %s220 = smul.u32 64, %s21
        %v221 = vld [vmem:[%s188] sm:$0xff]
        %v222 = vld [vmem:[%s188 + $0x8] sm:$0xff]
        %v223 = vld [vmem:[%s188 + $0x10] sm:$0xff]
        %v224 = vld [vmem:[%s188 + $0x18] sm:$0xff]
        %v225 = vld [vmem:[%s188 + $0x20] sm:$0xff]
        %v226 = vld [vmem:[%s188 + $0x28] sm:$0xff]
        %v227 = vld [vmem:[%s188 + $0x30] sm:$0xff]
        %v228 = vld [vmem:[%s188 + $0x38] sm:$0xff]
        %v229 = vld [vmem:[%s188 + $0x40] sm:$0xff]
        %v230 = vld [vmem:[%s188 + $0x48] sm:$0xff]
        %v231 = vld [vmem:[%s188 + $0x50] sm:$0xff]
        %v232 = vld [vmem:[%s188 + $0x58] sm:$0xff]
        %v233 = vld [vmem:[%s188 + $0x60] sm:$0xff]
        %v234 = vld [vmem:[%s188 + $0x68] sm:$0xff]
        %v235 = vld [vmem:[%s188 + $0x70] sm:$0xff]
        %v236 = vld [vmem:[%s188 + $0x78] sm:$0xff]
        %v237 = vld [vmem:[%s188 + $0x80] sm:$0xff]
        %v238 = vld [vmem:[%s188 + $0x88] sm:$0xff]
        %v239 = vld [vmem:[%s188 + $0x90] sm:$0xff]
        %v240 = vld [vmem:[%s188 + $0x98] sm:$0xff]
        %v241 = vld [vmem:[%s188 + $0xa0] sm:$0xff]
        %v242 = vld [vmem:[%s188 + $0xa8] sm:$0xff]
        %v243 = vld [vmem:[%s188 + $0xb0] sm:$0xff]
        %v244 = vld [vmem:[%s188 + $0xb8] sm:$0xff]
        %v245 = vld [vmem:[%s188 + $0xc0] sm:$0xff]
        %v246 = vld [vmem:[%s188 + $0xc8] sm:$0xff]
        %v247 = vld [vmem:[%s188 + $0xd0] sm:$0xff]
        %v248 = vld [vmem:[%s188 + $0xd8] sm:$0xff]
        %v249 = vld [vmem:[%s188 + $0xe0] sm:$0xff]
        %v250 = vld [vmem:[%s188 + $0xe8] sm:$0xff]
        %v251 = vld [vmem:[%s188 + $0xf0] sm:$0xff]
        %v252 = vld [vmem:[%s188 + $0xf8] sm:$0xff]
        %v253 = vld [vmem:[%s188 + $0x100] sm:$0xff]
        %v254 = vld [vmem:[%s188 + $0x108] sm:$0xff]
        %v255 = vld [vmem:[%s188 + $0x110] sm:$0xff]
        %v256 = vld [vmem:[%s188 + $0x118] sm:$0xff]
        %v257 = vld [vmem:[%s188 + $0x120] sm:$0xff]
        %v258 = vld [vmem:[%s188 + $0x128] sm:$0xff]
        %v259 = vld [vmem:[%s188 + $0x130] sm:$0xff]
        %v260 = vld [vmem:[%s188 + $0x138] sm:$0xff]
        %v261 = vld [vmem:[%s188 + $0x140] sm:$0xff]
        %v262 = vld [vmem:[%s188 + $0x148] sm:$0xff]
        %v263 = vld [vmem:[%s188 + $0x150] sm:$0xff]
        %v264 = vld [vmem:[%s188 + $0x158] sm:$0xff]
        %v265 = vld [vmem:[%s188 + $0x160] sm:$0xff]
        %v266 = vld [vmem:[%s188 + $0x168] sm:$0xff]
        %v267 = vld [vmem:[%s188 + $0x170] sm:$0xff]
        %v268 = vld [vmem:[%s188 + $0x178] sm:$0xff]
        %v269 = vld [vmem:[%s188 + $0x180] sm:$0xff]
        %v270 = vld [vmem:[%s188 + $0x188] sm:$0xff]
        %v271 = vld [vmem:[%s188 + $0x190] sm:$0xff]
        %v272 = vld [vmem:[%s188 + $0x198] sm:$0xff]
        %v273 = vld [vmem:[%s188 + $0x1a0] sm:$0xff]
        %v274 = vld [vmem:[%s188 + $0x1a8] sm:$0xff]
        %v275 = vld [vmem:[%s188 + $0x1b0] sm:$0xff]
        %v276 = vld [vmem:[%s188 + $0x1b8] sm:$0xff]
        %v277 = vld [vmem:[%s188 + $0x1c0] sm:$0xff]
        %v278 = vld [vmem:[%s188 + $0x1c8] sm:$0xff]
        %v279 = vld [vmem:[%s188 + $0x1d0] sm:$0xff]
        %v280 = vld [vmem:[%s188 + $0x1d8] sm:$0xff]
        %v281 = vld [vmem:[%s188 + $0x1e0] sm:$0xff]
        %v282 = vld [vmem:[%s188 + $0x1e8] sm:$0xff]
        %v283 = vld [vmem:[%s188 + $0x1f0] sm:$0xff]
        %v284 = vld [vmem:[%s188 + $0x1f8] sm:$0xff]
        %v285 = vld [vmem:[#allocation5] sm:$0xff]
        %v286 = vld [vmem:[#allocation5 + $0x8] sm:$0xff]
        %v287 = vld [vmem:[#allocation5 + $0x10] sm:$0xff]
        %v288 = vld [vmem:[#allocation5 + $0x18] sm:$0xff]
        %v289 = vld [vmem:[#allocation5 + $0x20] sm:$0xff]
        %v290 = vld [vmem:[#allocation5 + $0x28] sm:$0xff]
        %v291 = vld [vmem:[#allocation5 + $0x30] sm:$0xff]
        %v292 = vld [vmem:[#allocation5 + $0x38] sm:$0xff]
        %v293 = vld [vmem:[#allocation5 + $0x40] sm:$0xff]
        %v294 = vld [vmem:[#allocation5 + $0x48] sm:$0xff]
        %v295 = vld [vmem:[#allocation5 + $0x50] sm:$0xff]
        %v296 = vld [vmem:[#allocation5 + $0x58] sm:$0xff]
        %v297 = vld [vmem:[#allocation5 + $0x60] sm:$0xff]
        %v298 = vld [vmem:[#allocation5 + $0x68] sm:$0xff]
        %v299 = vld [vmem:[#allocation5 + $0x70] sm:$0xff]
        %v300 = vld [vmem:[#allocation5 + $0x78] sm:$0xff]
        %v301 = vld [vmem:[#allocation5 + $0x80] sm:$0xff]
        %v302 = vld [vmem:[#allocation5 + $0x88] sm:$0xff]
        %v303 = vld [vmem:[#allocation5 + $0x90] sm:$0xff]
        %v304 = vld [vmem:[#allocation5 + $0x98] sm:$0xff]
        %v305 = vld [vmem:[#allocation5 + $0xa0] sm:$0xff]
        %v306 = vld [vmem:[#allocation5 + $0xa8] sm:$0xff]
        %v307 = vld [vmem:[#allocation5 + $0xb0] sm:$0xff]
        %v308 = vld [vmem:[#allocation5 + $0xb8] sm:$0xff]
        %v309 = vld [vmem:[#allocation5 + $0xc0] sm:$0xff]
        %v310 = vld [vmem:[#allocation5 + $0xc8] sm:$0xff]
        %v311 = vld [vmem:[#allocation5 + $0xd0] sm:$0xff]
        %v312 = vld [vmem:[#allocation5 + $0xd8] sm:$0xff]
        %v313 = vld [vmem:[#allocation5 + $0xe0] sm:$0xff]
        %v314 = vld [vmem:[#allocation5 + $0xe8] sm:$0xff]
        %v315 = vld [vmem:[#allocation5 + $0xf0] sm:$0xff]
        %v316 = vld [vmem:[#allocation5 + $0xf8] sm:$0xff]
        %v381 = vunpack.c.l.b16 %v221
        %v382 = vunpack.c.h.b16 %v221
        %v383 = vunpack.c.l.b16 %v222
        %v384 = vunpack.c.h.b16 %v222
        %v385 = vunpack.c.l.b16 %v223
        %v386 = vunpack.c.h.b16 %v223
        %v387 = vunpack.c.l.b16 %v224
        %v388 = vunpack.c.h.b16 %v224
        %v389 = vunpack.c.l.b16 %v225
        %v390 = vunpack.c.h.b16 %v225
        %v391 = vunpack.c.l.b16 %v226
        %v392 = vunpack.c.h.b16 %v226
        %v393 = vunpack.c.l.b16 %v227
        %v394 = vunpack.c.h.b16 %v227
        %v395 = vunpack.c.l.b16 %v228
        %v396 = vunpack.c.h.b16 %v228
        %v397 = vunpack.c.l.b16 %v229
        %v398 = vunpack.c.h.b16 %v229
        %v399 = vunpack.c.l.b16 %v230
        %v400 = vunpack.c.h.b16 %v230
        %v401 = vunpack.c.l.b16 %v231
        %v402 = vunpack.c.h.b16 %v231
        %v403 = vunpack.c.l.b16 %v232
        %v404 = vunpack.c.h.b16 %v232
        %v405 = vunpack.c.l.b16 %v233
        %v406 = vunpack.c.h.b16 %v233
        %v407 = vunpack.c.l.b16 %v234
        %v408 = vunpack.c.h.b16 %v234
        %v409 = vunpack.c.l.b16 %v235
        %v410 = vunpack.c.h.b16 %v235
        %v411 = vunpack.c.l.b16 %v236
        %v412 = vunpack.c.h.b16 %v236
        %v413 = vunpack.c.l.b16 %v237
        %v414 = vunpack.c.h.b16 %v237
        %v415 = vunpack.c.l.b16 %v238
        %v416 = vunpack.c.h.b16 %v238
        %v417 = vunpack.c.l.b16 %v239
        %v418 = vunpack.c.h.b16 %v239
        %v419 = vunpack.c.l.b16 %v240
        %v420 = vunpack.c.h.b16 %v240
        %v421 = vunpack.c.l.b16 %v241
        %v422 = vunpack.c.h.b16 %v241
        %v423 = vunpack.c.l.b16 %v242
        %v424 = vunpack.c.h.b16 %v242
        %v425 = vunpack.c.l.b16 %v243
        %v426 = vunpack.c.h.b16 %v243
        %v427 = vunpack.c.l.b16 %v244
        %v428 = vunpack.c.h.b16 %v244
        %v429 = vunpack.c.l.b16 %v245
        %v430 = vunpack.c.h.b16 %v245
        %v431 = vunpack.c.l.b16 %v246
        %v432 = vunpack.c.h.b16 %v246
        %v433 = vunpack.c.l.b16 %v247
        %v434 = vunpack.c.h.b16 %v247
        %v435 = vunpack.c.l.b16 %v248
        %v436 = vunpack.c.h.b16 %v248
        %v437 = vunpack.c.l.b16 %v249
        %v438 = vunpack.c.h.b16 %v249
        %v439 = vunpack.c.l.b16 %v250
        %v440 = vunpack.c.h.b16 %v250
        %v441 = vunpack.c.l.b16 %v251
        %v442 = vunpack.c.h.b16 %v251
        %v443 = vunpack.c.l.b16 %v252
        %v444 = vunpack.c.h.b16 %v252
        %v445 = vunpack.c.l.b16 %v253
        %v446 = vunpack.c.h.b16 %v253
        %v447 = vunpack.c.l.b16 %v254
        %v448 = vunpack.c.h.b16 %v254
        %v449 = vunpack.c.l.b16 %v255
        %v450 = vunpack.c.h.b16 %v255
        %v451 = vunpack.c.l.b16 %v256
        %v452 = vunpack.c.h.b16 %v256
        %v453 = vunpack.c.l.b16 %v257
        %v454 = vunpack.c.h.b16 %v257
        %v455 = vunpack.c.l.b16 %v258
        %v456 = vunpack.c.h.b16 %v258
        %v457 = vunpack.c.l.b16 %v259
        %v458 = vunpack.c.h.b16 %v259
        %v459 = vunpack.c.l.b16 %v260
        %v460 = vunpack.c.h.b16 %v260
        %v461 = vunpack.c.l.b16 %v261
        %v462 = vunpack.c.h.b16 %v261
        %v463 = vunpack.c.l.b16 %v262
        %v464 = vunpack.c.h.b16 %v262
        %v465 = vunpack.c.l.b16 %v263
        %v466 = vunpack.c.h.b16 %v263
        %v467 = vunpack.c.l.b16 %v264
        %v468 = vunpack.c.h.b16 %v264
        %v469 = vunpack.c.l.b16 %v265
        %v470 = vunpack.c.h.b16 %v265
        %v471 = vunpack.c.l.b16 %v266
        %v472 = vunpack.c.h.b16 %v266
        %v473 = vunpack.c.l.b16 %v267
        %v474 = vunpack.c.h.b16 %v267
        %v475 = vunpack.c.l.b16 %v268
        %v476 = vunpack.c.h.b16 %v268
        %v477 = vunpack.c.l.b16 %v269
        %v478 = vunpack.c.h.b16 %v269
        %v479 = vunpack.c.l.b16 %v270
        %v480 = vunpack.c.h.b16 %v270
        %v481 = vunpack.c.l.b16 %v271
        %v482 = vunpack.c.h.b16 %v271
        %v483 = vunpack.c.l.b16 %v272
        %v484 = vunpack.c.h.b16 %v272
        %v485 = vunpack.c.l.b16 %v273
        %v486 = vunpack.c.h.b16 %v273
        %v487 = vunpack.c.l.b16 %v274
        %v488 = vunpack.c.h.b16 %v274
        %v489 = vunpack.c.l.b16 %v275
        %v490 = vunpack.c.h.b16 %v275
        %v491 = vunpack.c.l.b16 %v276
        %v492 = vunpack.c.h.b16 %v276
        %v493 = vunpack.c.l.b16 %v277
        %v494 = vunpack.c.h.b16 %v277
        %v495 = vunpack.c.l.b16 %v278
        %v496 = vunpack.c.h.b16 %v278
        %v497 = vunpack.c.l.b16 %v279
        %v498 = vunpack.c.h.b16 %v279
        %v499 = vunpack.c.l.b16 %v280
        %v500 = vunpack.c.h.b16 %v280
        %v501 = vunpack.c.l.b16 %v281
        %v502 = vunpack.c.h.b16 %v281
        %v503 = vunpack.c.l.b16 %v282
        %v504 = vunpack.c.h.b16 %v282
        %v505 = vunpack.c.l.b16 %v283
        %v506 = vunpack.c.h.b16 %v283
        %v507 = vunpack.c.l.b16 %v284
        %v508 = vunpack.c.h.b16 %v284
        %v509 = vpack.c.b16 %v383, %v381
        %v510 = vpack.c.b16 %v384, %v382
        %v511 = vpack.c.b16 %v387, %v385
        %v512 = vpack.c.b16 %v388, %v386
        %v513 = vpack.c.b16 %v391, %v389
        %v514 = vpack.c.b16 %v392, %v390
        %v515 = vpack.c.b16 %v395, %v393
        %v516 = vpack.c.b16 %v396, %v394
        %v517 = vpack.c.b16 %v399, %v397
        %v518 = vpack.c.b16 %v400, %v398
        %v519 = vpack.c.b16 %v403, %v401
        %v520 = vpack.c.b16 %v404, %v402
        %v521 = vpack.c.b16 %v407, %v405
        %v522 = vpack.c.b16 %v408, %v406
        %v523 = vpack.c.b16 %v411, %v409
        %v524 = vpack.c.b16 %v412, %v410
        %v525 = vpack.c.b16 %v415, %v413
        %v526 = vpack.c.b16 %v416, %v414
        %v527 = vpack.c.b16 %v419, %v417
        %v528 = vpack.c.b16 %v420, %v418
        %v529 = vpack.c.b16 %v423, %v421
        %v530 = vpack.c.b16 %v424, %v422
        %v531 = vpack.c.b16 %v427, %v425
        %v532 = vpack.c.b16 %v428, %v426
        %v533 = vpack.c.b16 %v431, %v429
        %v534 = vpack.c.b16 %v432, %v430
        %v535 = vpack.c.b16 %v435, %v433
        %v536 = vpack.c.b16 %v436, %v434
        %v537 = vpack.c.b16 %v439, %v437
        %v538 = vpack.c.b16 %v440, %v438
        %v539 = vpack.c.b16 %v443, %v441
        %v540 = vpack.c.b16 %v444, %v442
        %v541 = vpack.c.b16 %v447, %v445
        %v542 = vpack.c.b16 %v448, %v446
        %v543 = vpack.c.b16 %v451, %v449
        %v544 = vpack.c.b16 %v452, %v450
        %v545 = vpack.c.b16 %v455, %v453
        %v546 = vpack.c.b16 %v456, %v454
        %v547 = vpack.c.b16 %v459, %v457
        %v548 = vpack.c.b16 %v460, %v458
        %v549 = vpack.c.b16 %v463, %v461
        %v550 = vpack.c.b16 %v464, %v462
        %v551 = vpack.c.b16 %v467, %v465
        %v552 = vpack.c.b16 %v468, %v466
        %v553 = vpack.c.b16 %v471, %v469
        %v554 = vpack.c.b16 %v472, %v470
        %v555 = vpack.c.b16 %v475, %v473
        %v556 = vpack.c.b16 %v476, %v474
        %v557 = vpack.c.b16 %v479, %v477
        %v558 = vpack.c.b16 %v480, %v478
        %v559 = vpack.c.b16 %v483, %v481
        %v560 = vpack.c.b16 %v484, %v482
        %v561 = vpack.c.b16 %v487, %v485
        %v562 = vpack.c.b16 %v488, %v486
        %v563 = vpack.c.b16 %v491, %v489
        %v564 = vpack.c.b16 %v492, %v490
        %v565 = vpack.c.b16 %v495, %v493
        %v566 = vpack.c.b16 %v496, %v494
        %v567 = vpack.c.b16 %v499, %v497
        %v568 = vpack.c.b16 %v500, %v498
        %v569 = vpack.c.b16 %v503, %v501
        %v570 = vpack.c.b16 %v504, %v502
        %v571 = vpack.c.b16 %v507, %v505
        %v572 = vpack.c.b16 %v508, %v506
        %v669 = vunpack.c.l.b16 %v285
        %v670 = vunpack.c.h.b16 %v285
        %v671 = vunpack.c.l.b16 %v286
        %v672 = vunpack.c.h.b16 %v286
        %v673 = vunpack.c.l.b16 %v287
        %v674 = vunpack.c.h.b16 %v287
        %v675 = vunpack.c.l.b16 %v288
        %v676 = vunpack.c.h.b16 %v288
        %v677 = vunpack.c.l.b16 %v289
        %v678 = vunpack.c.h.b16 %v289
        %v679 = vunpack.c.l.b16 %v290
        %v680 = vunpack.c.h.b16 %v290
        %v681 = vunpack.c.l.b16 %v291
        %v682 = vunpack.c.h.b16 %v291
        %v683 = vunpack.c.l.b16 %v292
        %v684 = vunpack.c.h.b16 %v292
        %v685 = vunpack.c.l.b16 %v293
        %v686 = vunpack.c.h.b16 %v293
        %v687 = vunpack.c.l.b16 %v294
        %v688 = vunpack.c.h.b16 %v294
        %v689 = vunpack.c.l.b16 %v295
        %v690 = vunpack.c.h.b16 %v295
        %v691 = vunpack.c.l.b16 %v296
        %v692 = vunpack.c.h.b16 %v296
        %v693 = vunpack.c.l.b16 %v297
        %v694 = vunpack.c.h.b16 %v297
        %v695 = vunpack.c.l.b16 %v298
        %v696 = vunpack.c.h.b16 %v298
        %v697 = vunpack.c.l.b16 %v299
        %v698 = vunpack.c.h.b16 %v299
        %v699 = vunpack.c.l.b16 %v300
        %v700 = vunpack.c.h.b16 %v300
        %v701 = vunpack.c.l.b16 %v301
        %v702 = vunpack.c.h.b16 %v301
        %v703 = vunpack.c.l.b16 %v302
        %v704 = vunpack.c.h.b16 %v302
        %v705 = vunpack.c.l.b16 %v303
        %v706 = vunpack.c.h.b16 %v303
        %v707 = vunpack.c.l.b16 %v304
        %v708 = vunpack.c.h.b16 %v304
        %v709 = vunpack.c.l.b16 %v305
        %v710 = vunpack.c.h.b16 %v305
        %v711 = vunpack.c.l.b16 %v306
        %v712 = vunpack.c.h.b16 %v306
        %v713 = vunpack.c.l.b16 %v307
        %v714 = vunpack.c.h.b16 %v307
        %v715 = vunpack.c.l.b16 %v308
        %v716 = vunpack.c.h.b16 %v308
        %v717 = vunpack.c.l.b16 %v309
        %v718 = vunpack.c.h.b16 %v309
        %v719 = vunpack.c.l.b16 %v310
        %v720 = vunpack.c.h.b16 %v310
        %v721 = vunpack.c.l.b16 %v311
        %v722 = vunpack.c.h.b16 %v311
        %v723 = vunpack.c.l.b16 %v312
        %v724 = vunpack.c.h.b16 %v312
        %v725 = vunpack.c.l.b16 %v313
        %v726 = vunpack.c.h.b16 %v313
        %v727 = vunpack.c.l.b16 %v314
        %v728 = vunpack.c.h.b16 %v314
        %v729 = vunpack.c.l.b16 %v315
        %v730 = vunpack.c.h.b16 %v315
        %v731 = vunpack.c.l.b16 %v316
        %v732 = vunpack.c.h.b16 %v316
        %v733 = vpack.c.b16 %v671, %v669
        %v734 = vpack.c.b16 %v672, %v670
        %v735 = vpack.c.b16 %v675, %v673
        %v736 = vpack.c.b16 %v676, %v674
        %v737 = vpack.c.b16 %v679, %v677
        %v738 = vpack.c.b16 %v680, %v678
        %v739 = vpack.c.b16 %v683, %v681
        %v740 = vpack.c.b16 %v684, %v682
        %v741 = vpack.c.b16 %v687, %v685
        %v742 = vpack.c.b16 %v688, %v686
        %v743 = vpack.c.b16 %v691, %v689
        %v744 = vpack.c.b16 %v692, %v690
        %v745 = vpack.c.b16 %v695, %v693
        %v746 = vpack.c.b16 %v696, %v694
        %v747 = vpack.c.b16 %v699, %v697
        %v748 = vpack.c.b16 %v700, %v698
        %v749 = vpack.c.b16 %v703, %v701
        %v750 = vpack.c.b16 %v704, %v702
        %v751 = vpack.c.b16 %v707, %v705
        %v752 = vpack.c.b16 %v708, %v706
        %v753 = vpack.c.b16 %v711, %v709
        %v754 = vpack.c.b16 %v712, %v710
        %v755 = vpack.c.b16 %v715, %v713
        %v756 = vpack.c.b16 %v716, %v714
        %v757 = vpack.c.b16 %v719, %v717
        %v758 = vpack.c.b16 %v720, %v718
        %v759 = vpack.c.b16 %v723, %v721
        %v760 = vpack.c.b16 %v724, %v722
        %v761 = vpack.c.b16 %v727, %v725
        %v762 = vpack.c.b16 %v728, %v726
        %v763 = vpack.c.b16 %v731, %v729
        %v764 = vpack.c.b16 %v732, %v730
        %797 = vmatprep.subr.bf16.mxu0 %v748
        %798 = vmatpush1.bf16.msra.mxu0 %v747
        %799 = vmatprep.subr.bf16.mxu0 %v746
        %800 = vmatpush1.bf16.msra.mxu0 %v745
        %801 = vmatprep.subr.bf16.mxu0 %v744
        %802 = vmatpush1.bf16.msra.mxu0 %v743
        %803 = vmatprep.subr.bf16.mxu0 %v742
        %804 = vmatpush1.bf16.msra.mxu0 %v741
        %805 = vmatprep.subr.bf16.mxu0 %v740
        %806 = vmatpush1.bf16.msra.mxu0 %v739
        %807 = vmatprep.subr.bf16.mxu0 %v738
        %808 = vmatpush1.bf16.msra.mxu0 %v737
        %809 = vmatprep.subr.bf16.mxu0 %v736
        %810 = vmatpush1.bf16.msra.mxu0 %v735
        %811 = vmatprep.subr.bf16.mxu0 %v734
        %812 = vmatpush1.bf16.msra.mxu0 %v733
        %813 = vmatprep.subr.bf16.mxu0 %v764
        %814 = vmatpush2.bf16.msra.mxu0 %v763
        %815 = vmatprep.subr.bf16.mxu0 %v762
        %816 = vmatpush2.bf16.msra.mxu0 %v761
        %817 = vmatprep.subr.bf16.mxu0 %v760
        %818 = vmatpush2.bf16.msra.mxu0 %v759
        %819 = vmatprep.subr.bf16.mxu0 %v758
        %820 = vmatpush2.bf16.msra.mxu0 %v757
        %821 = vmatprep.subr.bf16.mxu0 %v756
        %822 = vmatpush2.bf16.msra.mxu0 %v755
        %823 = vmatprep.subr.bf16.mxu0 %v754
        %824 = vmatpush2.bf16.msra.mxu0 %v753
        %825 = vmatprep.subr.bf16.mxu0 %v752
        %826 = vmatpush2.bf16.msra.mxu0 %v751
        %827 = vmatprep.subr.bf16.mxu0 %v750
        %828 = vmatpush2.bf16.msra.mxu0 %v749
        %829 = vmatprep.mubr.bf16.mxu0 %v510
        %830 = vmatmul.mubr.bf16.gmra.mxu0 %v509
        %v831 = vpop.f32.mrf.mxu0
        %v832 = vadd.f32 0.0, %v831
        %v833 = vpop.f32.mrf.mxu0
        %v834 = vadd.f32 0.0, %v833
        %v835 = vpop.f32.mrf.mxu0
        %v836 = vadd.f32 0.0, %v835
        %v837 = vpop.f32.mrf.mxu0
        %v838 = vadd.f32 0.0, %v837
        %839 = vmatprep.mubr.bf16.mxu0 %v512
        %840 = vmatmul.mubr.bf16.gmra.mxu0 %v511
        %v841 = vpop.f32.mrf.mxu0
        %v842 = vadd.f32 0.0, %v841
        %v843 = vpop.f32.mrf.mxu0
        %v844 = vadd.f32 0.0, %v843
        %v845 = vpop.f32.mrf.mxu0
        %v846 = vadd.f32 0.0, %v845
        %v847 = vpop.f32.mrf.mxu0
        %v848 = vadd.f32 0.0, %v847
        %849 = vmatprep.mubr.bf16.mxu0 %v514
        %850 = vmatmul.mubr.bf16.gmra.mxu0 %v513
        %v851 = vpop.f32.mrf.mxu0
        %v852 = vadd.f32 0.0, %v851
        %v853 = vpop.f32.mrf.mxu0
        %v854 = vadd.f32 0.0, %v853
        %v855 = vpop.f32.mrf.mxu0
        %v856 = vadd.f32 0.0, %v855
        %v857 = vpop.f32.mrf.mxu0
        %v858 = vadd.f32 0.0, %v857
        %859 = vmatprep.mubr.bf16.mxu0 %v516
        %860 = vmatmul.mubr.bf16.gmra.mxu0 %v515
        %v861 = vpop.f32.mrf.mxu0
        %v862 = vadd.f32 0.0, %v861
        %v863 = vpop.f32.mrf.mxu0
        %v864 = vadd.f32 0.0, %v863
        %v865 = vpop.f32.mrf.mxu0
        %v866 = vadd.f32 0.0, %v865
        %v867 = vpop.f32.mrf.mxu0
        %v868 = vadd.f32 0.0, %v867
        %869 = vmatprep.mubr.bf16.mxu0 %v518
        %870 = vmatmul.mubr.bf16.gmra.mxu0 %v517
        %v871 = vpop.f32.mrf.mxu0
        %v872 = vadd.f32 0.0, %v871
        %v873 = vpop.f32.mrf.mxu0
        %v874 = vadd.f32 0.0, %v873
        %v875 = vpop.f32.mrf.mxu0
        %v876 = vadd.f32 0.0, %v875
        %v877 = vpop.f32.mrf.mxu0
        %v878 = vadd.f32 0.0, %v877
        %879 = vmatprep.mubr.bf16.mxu0 %v520
        %880 = vmatmul.mubr.bf16.gmra.mxu0 %v519
        %v881 = vpop.f32.mrf.mxu0
        %v882 = vadd.f32 0.0, %v881
        %v883 = vpop.f32.mrf.mxu0
        %v884 = vadd.f32 0.0, %v883
        %v885 = vpop.f32.mrf.mxu0
        %v886 = vadd.f32 0.0, %v885
        %v887 = vpop.f32.mrf.mxu0
        %v888 = vadd.f32 0.0, %v887
        %889 = vmatprep.mubr.bf16.mxu0 %v522
        %890 = vmatmul.mubr.bf16.gmra.mxu0 %v521
        %v891 = vpop.f32.mrf.mxu0
        %v892 = vadd.f32 0.0, %v891
        %v893 = vpop.f32.mrf.mxu0
        %v894 = vadd.f32 0.0, %v893
        %v895 = vpop.f32.mrf.mxu0
        %v896 = vadd.f32 0.0, %v895
        %v897 = vpop.f32.mrf.mxu0
        %v898 = vadd.f32 0.0, %v897
        %899 = vmatprep.mubr.bf16.mxu0 %v524
        %900 = vmatmul.mubr.bf16.gmra.mxu0 %v523
        %v901 = vpop.f32.mrf.mxu0
        %v902 = vadd.f32 0.0, %v901
        %v903 = vpop.f32.mrf.mxu0
        %v904 = vadd.f32 0.0, %v903
        %v905 = vpop.f32.mrf.mxu0
        %v906 = vadd.f32 0.0, %v905
        %v907 = vpop.f32.mrf.mxu0
        %v908 = vadd.f32 0.0, %v907
        %909 = vmatprep.mubr.bf16.mxu0 %v526
        %910 = vmatmul.mubr.bf16.gmra.mxu0 %v525
        %v911 = vpop.f32.mrf.mxu0
        %v912 = vadd.f32 0.0, %v911
        %v913 = vpop.f32.mrf.mxu0
        %v914 = vadd.f32 0.0, %v913
        %v915 = vpop.f32.mrf.mxu0
        %v916 = vadd.f32 0.0, %v915
        %v917 = vpop.f32.mrf.mxu0
        %v918 = vadd.f32 0.0, %v917
        %919 = vmatprep.mubr.bf16.mxu0 %v528
        %920 = vmatmul.mubr.bf16.gmra.mxu0 %v527
        %v921 = vpop.f32.mrf.mxu0
        %v922 = vadd.f32 0.0, %v921
        %v923 = vpop.f32.mrf.mxu0
        %v924 = vadd.f32 0.0, %v923
        %v925 = vpop.f32.mrf.mxu0
        %v926 = vadd.f32 0.0, %v925
        %v927 = vpop.f32.mrf.mxu0
        %v928 = vadd.f32 0.0, %v927
        %929 = vmatprep.mubr.bf16.mxu0 %v530
        %930 = vmatmul.mubr.bf16.gmra.mxu0 %v529
        %v931 = vpop.f32.mrf.mxu0
        %v932 = vadd.f32 0.0, %v931
        %v933 = vpop.f32.mrf.mxu0
        %v934 = vadd.f32 0.0, %v933
        %v935 = vpop.f32.mrf.mxu0
        %v936 = vadd.f32 0.0, %v935
        %v937 = vpop.f32.mrf.mxu0
        %v938 = vadd.f32 0.0, %v937
        %939 = vmatprep.mubr.bf16.mxu0 %v532
        %940 = vmatmul.mubr.bf16.gmra.mxu0 %v531
        %v941 = vpop.f32.mrf.mxu0
        %v942 = vadd.f32 0.0, %v941
        %v943 = vpop.f32.mrf.mxu0
        %v944 = vadd.f32 0.0, %v943
        %v945 = vpop.f32.mrf.mxu0
        %v946 = vadd.f32 0.0, %v945
        %v947 = vpop.f32.mrf.mxu0
        %v948 = vadd.f32 0.0, %v947
        %949 = vmatprep.mubr.bf16.mxu0 %v534
        %950 = vmatmul.mubr.bf16.gmra.mxu0 %v533
        %v951 = vpop.f32.mrf.mxu0
        %v952 = vadd.f32 0.0, %v951
        %v953 = vpop.f32.mrf.mxu0
        %v954 = vadd.f32 0.0, %v953
        %v955 = vpop.f32.mrf.mxu0
        %v956 = vadd.f32 0.0, %v955
        %v957 = vpop.f32.mrf.mxu0
        %v958 = vadd.f32 0.0, %v957
        %959 = vmatprep.mubr.bf16.mxu0 %v536
        %960 = vmatmul.mubr.bf16.gmra.mxu0 %v535
        %v961 = vpop.f32.mrf.mxu0
        %v962 = vadd.f32 0.0, %v961
        %v963 = vpop.f32.mrf.mxu0
        %v964 = vadd.f32 0.0, %v963
        %v965 = vpop.f32.mrf.mxu0
        %v966 = vadd.f32 0.0, %v965
        %v967 = vpop.f32.mrf.mxu0
        %v968 = vadd.f32 0.0, %v967
        %969 = vmatprep.mubr.bf16.mxu0 %v538
        %970 = vmatmul.mubr.bf16.gmra.mxu0 %v537
        %v971 = vpop.f32.mrf.mxu0
        %v972 = vadd.f32 0.0, %v971
        %v973 = vpop.f32.mrf.mxu0
        %v974 = vadd.f32 0.0, %v973
        %v975 = vpop.f32.mrf.mxu0
        %v976 = vadd.f32 0.0, %v975
        %v977 = vpop.f32.mrf.mxu0
        %v978 = vadd.f32 0.0, %v977
        %979 = vmatprep.mubr.bf16.mxu0 %v540
        %980 = vmatmul.mubr.bf16.gmra.mxu0 %v539
        %v981 = vpop.f32.mrf.mxu0
        %v982 = vadd.f32 0.0, %v981
        %v983 = vpop.f32.mrf.mxu0
        %v984 = vadd.f32 0.0, %v983
        %v985 = vpop.f32.mrf.mxu0
        %v986 = vadd.f32 0.0, %v985
        %v987 = vpop.f32.mrf.mxu0
        %v988 = vadd.f32 0.0, %v987
        %989 = vmatprep.mubr.bf16.mxu0 %v542
        %990 = vmatmul.mubr.bf16.gmra.mxu0 %v541
        %v991 = vpop.f32.mrf.mxu0
        %v992 = vadd.f32 0.0, %v991
        %v993 = vpop.f32.mrf.mxu0
        %v994 = vadd.f32 0.0, %v993
        %v995 = vpop.f32.mrf.mxu0
        %v996 = vadd.f32 0.0, %v995
        %v997 = vpop.f32.mrf.mxu0
        %v998 = vadd.f32 0.0, %v997
        %999 = vmatprep.mubr.bf16.mxu0 %v544
        %1000 = vmatmul.mubr.bf16.gmra.mxu0 %v543
        %v1001 = vpop.f32.mrf.mxu0
        %v1002 = vadd.f32 0.0, %v1001
        %v1003 = vpop.f32.mrf.mxu0
        %v1004 = vadd.f32 0.0, %v1003
        %v1005 = vpop.f32.mrf.mxu0
        %v1006 = vadd.f32 0.0, %v1005
        %v1007 = vpop.f32.mrf.mxu0
        %v1008 = vadd.f32 0.0, %v1007
        %1009 = vmatprep.mubr.bf16.mxu0 %v546
        %1010 = vmatmul.mubr.bf16.gmra.mxu0 %v545
        %v1011 = vpop.f32.mrf.mxu0
        %v1012 = vadd.f32 0.0, %v1011
        %v1013 = vpop.f32.mrf.mxu0
        %v1014 = vadd.f32 0.0, %v1013
        %v1015 = vpop.f32.mrf.mxu0
        %v1016 = vadd.f32 0.0, %v1015
        %v1017 = vpop.f32.mrf.mxu0
        %v1018 = vadd.f32 0.0, %v1017
        %1019 = vmatprep.mubr.bf16.mxu0 %v548
        %1020 = vmatmul.mubr.bf16.gmra.mxu0 %v547
        %v1021 = vpop.f32.mrf.mxu0
        %v1022 = vadd.f32 0.0, %v1021
        %v1023 = vpop.f32.mrf.mxu0
        %v1024 = vadd.f32 0.0, %v1023
        %v1025 = vpop.f32.mrf.mxu0
        %v1026 = vadd.f32 0.0, %v1025
        %v1027 = vpop.f32.mrf.mxu0
        %v1028 = vadd.f32 0.0, %v1027
        %1029 = vmatprep.mubr.bf16.mxu0 %v550
        %1030 = vmatmul.mubr.bf16.gmra.mxu0 %v549
        %v1031 = vpop.f32.mrf.mxu0
        %v1032 = vadd.f32 0.0, %v1031
        %v1033 = vpop.f32.mrf.mxu0
        %v1034 = vadd.f32 0.0, %v1033
        %v1035 = vpop.f32.mrf.mxu0
        %v1036 = vadd.f32 0.0, %v1035
        %v1037 = vpop.f32.mrf.mxu0
        %v1038 = vadd.f32 0.0, %v1037
        %1039 = vmatprep.mubr.bf16.mxu0 %v552
        %1040 = vmatmul.mubr.bf16.gmra.mxu0 %v551
        %v1041 = vpop.f32.mrf.mxu0
        %v1042 = vadd.f32 0.0, %v1041
        %v1043 = vpop.f32.mrf.mxu0
        %v1044 = vadd.f32 0.0, %v1043
        %v1045 = vpop.f32.mrf.mxu0
        %v1046 = vadd.f32 0.0, %v1045
        %v1047 = vpop.f32.mrf.mxu0
        %v1048 = vadd.f32 0.0, %v1047
        %1049 = vmatprep.mubr.bf16.mxu0 %v554
        %1050 = vmatmul.mubr.bf16.gmra.mxu0 %v553
        %v1051 = vpop.f32.mrf.mxu0
        %v1052 = vadd.f32 0.0, %v1051
        %v1053 = vpop.f32.mrf.mxu0
        %v1054 = vadd.f32 0.0, %v1053
        %v1055 = vpop.f32.mrf.mxu0
        %v1056 = vadd.f32 0.0, %v1055
        %v1057 = vpop.f32.mrf.mxu0
        %v1058 = vadd.f32 0.0, %v1057
        %1059 = vmatprep.mubr.bf16.mxu0 %v556
        %1060 = vmatmul.mubr.bf16.gmra.mxu0 %v555
        %v1061 = vpop.f32.mrf.mxu0
        %v1062 = vadd.f32 0.0, %v1061
        %v1063 = vpop.f32.mrf.mxu0
        %v1064 = vadd.f32 0.0, %v1063
        %v1065 = vpop.f32.mrf.mxu0
        %v1066 = vadd.f32 0.0, %v1065
        %v1067 = vpop.f32.mrf.mxu0
        %v1068 = vadd.f32 0.0, %v1067
        %1069 = vmatprep.mubr.bf16.mxu0 %v558
        %1070 = vmatmul.mubr.bf16.gmra.mxu0 %v557
        %v1071 = vpop.f32.mrf.mxu0
        %v1072 = vadd.f32 0.0, %v1071
        %v1073 = vpop.f32.mrf.mxu0
        %v1074 = vadd.f32 0.0, %v1073
        %v1075 = vpop.f32.mrf.mxu0
        %v1076 = vadd.f32 0.0, %v1075
        %v1077 = vpop.f32.mrf.mxu0
        %v1078 = vadd.f32 0.0, %v1077
        %1079 = vmatprep.mubr.bf16.mxu0 %v560
        %1080 = vmatmul.mubr.bf16.gmra.mxu0 %v559
        %v1081 = vpop.f32.mrf.mxu0
        %v1082 = vadd.f32 0.0, %v1081
        %v1083 = vpop.f32.mrf.mxu0
        %v1084 = vadd.f32 0.0, %v1083
        %v1085 = vpop.f32.mrf.mxu0
        %v1086 = vadd.f32 0.0, %v1085
        %v1087 = vpop.f32.mrf.mxu0
        %v1088 = vadd.f32 0.0, %v1087
        %1089 = vmatprep.mubr.bf16.mxu0 %v562
        %1090 = vmatmul.mubr.bf16.gmra.mxu0 %v561
        %v1091 = vpop.f32.mrf.mxu0
        %v1092 = vadd.f32 0.0, %v1091
        %v1093 = vpop.f32.mrf.mxu0
        %v1094 = vadd.f32 0.0, %v1093
        %v1095 = vpop.f32.mrf.mxu0
        %v1096 = vadd.f32 0.0, %v1095
        %v1097 = vpop.f32.mrf.mxu0
        %v1098 = vadd.f32 0.0, %v1097
        %1099 = vmatprep.mubr.bf16.mxu0 %v564
        %1100 = vmatmul.mubr.bf16.gmra.mxu0 %v563
        %v1101 = vpop.f32.mrf.mxu0
        %v1102 = vadd.f32 0.0, %v1101
        %v1103 = vpop.f32.mrf.mxu0
        %v1104 = vadd.f32 0.0, %v1103
        %v1105 = vpop.f32.mrf.mxu0
        %v1106 = vadd.f32 0.0, %v1105
        %v1107 = vpop.f32.mrf.mxu0
        %v1108 = vadd.f32 0.0, %v1107
        %1109 = vmatprep.mubr.bf16.mxu0 %v566
        %1110 = vmatmul.mubr.bf16.gmra.mxu0 %v565
        %v1111 = vpop.f32.mrf.mxu0
        %v1112 = vadd.f32 0.0, %v1111
        %v1113 = vpop.f32.mrf.mxu0
        %v1114 = vadd.f32 0.0, %v1113
        %v1115 = vpop.f32.mrf.mxu0
        %v1116 = vadd.f32 0.0, %v1115
        %v1117 = vpop.f32.mrf.mxu0
        %v1118 = vadd.f32 0.0, %v1117
        %1119 = vmatprep.mubr.bf16.mxu0 %v568
        %1120 = vmatmul.mubr.bf16.gmra.mxu0 %v567
        %v1121 = vpop.f32.mrf.mxu0
        %v1122 = vadd.f32 0.0, %v1121
        %v1123 = vpop.f32.mrf.mxu0
        %v1124 = vadd.f32 0.0, %v1123
        %v1125 = vpop.f32.mrf.mxu0
        %v1126 = vadd.f32 0.0, %v1125
        %v1127 = vpop.f32.mrf.mxu0
        %v1128 = vadd.f32 0.0, %v1127
        %1129 = vmatprep.mubr.bf16.mxu0 %v570
        %1130 = vmatmul.mubr.bf16.gmra.mxu0 %v569
        %v1131 = vpop.f32.mrf.mxu0
        %v1132 = vadd.f32 0.0, %v1131
        %v1133 = vpop.f32.mrf.mxu0
        %v1134 = vadd.f32 0.0, %v1133
        %v1135 = vpop.f32.mrf.mxu0
        %v1136 = vadd.f32 0.0, %v1135
        %v1137 = vpop.f32.mrf.mxu0
        %v1138 = vadd.f32 0.0, %v1137
        %1139 = vmatprep.mubr.bf16.mxu0 %v572
        %1140 = vmatmul.mubr.bf16.gmra.mxu0 %v571
        %v1141 = vpop.f32.mrf.mxu0
        %v1142 = vadd.f32 0.0, %v1141
        %v1143 = vpop.f32.mrf.mxu0
        %v1144 = vadd.f32 0.0, %v1143
        %v1145 = vpop.f32.mrf.mxu0
        %v1146 = vadd.f32 0.0, %v1145
        %v1147 = vpop.f32.mrf.mxu0
        %v1148 = vadd.f32 0.0, %v1147
        %1149 = vdwg.mxu0
        %v1150 = vmax.f32 %v832, 0.0
        %v1151 = vmax.f32 %v834, 0.0
        %v1152 = vmax.f32 %v836, 0.0
        %v1153 = vmax.f32 %v838, 0.0
        %v1154 = vmax.f32 %v842, 0.0
        %v1155 = vmax.f32 %v844, 0.0
        %v1156 = vmax.f32 %v846, 0.0
        %v1157 = vmax.f32 %v848, 0.0
        %v1158 = vmax.f32 %v852, 0.0
        %v1159 = vmax.f32 %v854, 0.0
        %v1160 = vmax.f32 %v856, 0.0
        %v1161 = vmax.f32 %v858, 0.0
        %v1162 = vmax.f32 %v862, 0.0
        %v1163 = vmax.f32 %v864, 0.0
        %v1164 = vmax.f32 %v866, 0.0
        %v1165 = vmax.f32 %v868, 0.0
        %v1166 = vmax.f32 %v872, 0.0
        %v1167 = vmax.f32 %v874, 0.0
        %v1168 = vmax.f32 %v876, 0.0
        %v1169 = vmax.f32 %v878, 0.0
        %v1170 = vmax.f32 %v882, 0.0
        %v1171 = vmax.f32 %v884, 0.0
        %v1172 = vmax.f32 %v886, 0.0
        %v1173 = vmax.f32 %v888, 0.0
        %v1174 = vmax.f32 %v892, 0.0
        %v1175 = vmax.f32 %v894, 0.0
        %v1176 = vmax.f32 %v896, 0.0
        %v1177 = vmax.f32 %v898, 0.0
        %v1178 = vmax.f32 %v902, 0.0
        %v1179 = vmax.f32 %v904, 0.0
        %v1180 = vmax.f32 %v906, 0.0
        %v1181 = vmax.f32 %v908, 0.0
        %v1182 = vmax.f32 %v912, 0.0
        %v1183 = vmax.f32 %v914, 0.0
        %v1184 = vmax.f32 %v916, 0.0
        %v1185 = vmax.f32 %v918, 0.0
        %v1186 = vmax.f32 %v922, 0.0
        %v1187 = vmax.f32 %v924, 0.0
        %v1188 = vmax.f32 %v926, 0.0
        %v1189 = vmax.f32 %v928, 0.0
        %v1190 = vmax.f32 %v932, 0.0
        %v1191 = vmax.f32 %v934, 0.0
        %v1192 = vmax.f32 %v936, 0.0
        %v1193 = vmax.f32 %v938, 0.0
        %v1194 = vmax.f32 %v942, 0.0
        %v1195 = vmax.f32 %v944, 0.0
        %v1196 = vmax.f32 %v946, 0.0
        %v1197 = vmax.f32 %v948, 0.0
        %v1198 = vmax.f32 %v952, 0.0
        %v1199 = vmax.f32 %v954, 0.0
        %v1200 = vmax.f32 %v956, 0.0
        %v1201 = vmax.f32 %v958, 0.0
        %v1202 = vmax.f32 %v962, 0.0
        %v1203 = vmax.f32 %v964, 0.0
        %v1204 = vmax.f32 %v966, 0.0
        %v1205 = vmax.f32 %v968, 0.0
        %v1206 = vmax.f32 %v972, 0.0
        %v1207 = vmax.f32 %v974, 0.0
        %v1208 = vmax.f32 %v976, 0.0
        %v1209 = vmax.f32 %v978, 0.0
        %v1210 = vmax.f32 %v982, 0.0
        %v1211 = vmax.f32 %v984, 0.0
        %v1212 = vmax.f32 %v986, 0.0
        %v1213 = vmax.f32 %v988, 0.0
        %v1214 = vmax.f32 %v992, 0.0
        %v1215 = vmax.f32 %v994, 0.0
        %v1216 = vmax.f32 %v996, 0.0
        %v1217 = vmax.f32 %v998, 0.0
        %v1218 = vmax.f32 %v1002, 0.0
        %v1219 = vmax.f32 %v1004, 0.0
        %v1220 = vmax.f32 %v1006, 0.0
        %v1221 = vmax.f32 %v1008, 0.0
        %v1222 = vmax.f32 %v1012, 0.0
        %v1223 = vmax.f32 %v1014, 0.0
        %v1224 = vmax.f32 %v1016, 0.0
        %v1225 = vmax.f32 %v1018, 0.0
        %v1226 = vmax.f32 %v1022, 0.0
        %v1227 = vmax.f32 %v1024, 0.0
        %v1228 = vmax.f32 %v1026, 0.0
        %v1229 = vmax.f32 %v1028, 0.0
        %v1230 = vmax.f32 %v1032, 0.0
        %v1231 = vmax.f32 %v1034, 0.0
        %v1232 = vmax.f32 %v1036, 0.0
        %v1233 = vmax.f32 %v1038, 0.0
        %v1234 = vmax.f32 %v1042, 0.0
        %v1235 = vmax.f32 %v1044, 0.0
        %v1236 = vmax.f32 %v1046, 0.0
        %v1237 = vmax.f32 %v1048, 0.0
        %v1238 = vmax.f32 %v1052, 0.0
        %v1239 = vmax.f32 %v1054, 0.0
        %v1240 = vmax.f32 %v1056, 0.0
        %v1241 = vmax.f32 %v1058, 0.0
        %v1242 = vmax.f32 %v1062, 0.0
        %v1243 = vmax.f32 %v1064, 0.0
        %v1244 = vmax.f32 %v1066, 0.0
        %v1245 = vmax.f32 %v1068, 0.0
        %v1246 = vmax.f32 %v1072, 0.0
        %v1247 = vmax.f32 %v1074, 0.0
        %v1248 = vmax.f32 %v1076, 0.0
        %v1249 = vmax.f32 %v1078, 0.0
        %v1250 = vmax.f32 %v1082, 0.0
        %v1251 = vmax.f32 %v1084, 0.0
        %v1252 = vmax.f32 %v1086, 0.0
        %v1253 = vmax.f32 %v1088, 0.0
        %v1254 = vmax.f32 %v1092, 0.0
        %v1255 = vmax.f32 %v1094, 0.0
        %v1256 = vmax.f32 %v1096, 0.0
        %v1257 = vmax.f32 %v1098, 0.0
        %v1258 = vmax.f32 %v1102, 0.0
        %v1259 = vmax.f32 %v1104, 0.0
        %v1260 = vmax.f32 %v1106, 0.0
        %v1261 = vmax.f32 %v1108, 0.0
        %v1262 = vmax.f32 %v1112, 0.0
        %v1263 = vmax.f32 %v1114, 0.0
        %v1264 = vmax.f32 %v1116, 0.0
        %v1265 = vmax.f32 %v1118, 0.0
        %v1266 = vmax.f32 %v1122, 0.0
        %v1267 = vmax.f32 %v1124, 0.0
        %v1268 = vmax.f32 %v1126, 0.0
        %v1269 = vmax.f32 %v1128, 0.0
        %v1270 = vmax.f32 %v1132, 0.0
        %v1271 = vmax.f32 %v1134, 0.0
        %v1272 = vmax.f32 %v1136, 0.0
        %v1273 = vmax.f32 %v1138, 0.0
        %v1274 = vmax.f32 %v1142, 0.0
        %v1275 = vmax.f32 %v1144, 0.0
        %v1276 = vmax.f32 %v1146, 0.0
        %v1277 = vmax.f32 %v1148, 0.0
        %v1278 = vpack.c.bf16 %v1152, %v1150
        %v1279 = vpack.c.bf16 %v1153, %v1151
        %v1280 = vpack.c.bf16 %v1156, %v1154
        %v1281 = vpack.c.bf16 %v1157, %v1155
        %v1282 = vpack.c.bf16 %v1160, %v1158
        %v1283 = vpack.c.bf16 %v1161, %v1159
        %v1284 = vpack.c.bf16 %v1164, %v1162
        %v1285 = vpack.c.bf16 %v1165, %v1163
        %v1286 = vpack.c.bf16 %v1168, %v1166
        %v1287 = vpack.c.bf16 %v1169, %v1167
        %v1288 = vpack.c.bf16 %v1172, %v1170
        %v1289 = vpack.c.bf16 %v1173, %v1171
        %v1290 = vpack.c.bf16 %v1176, %v1174
        %v1291 = vpack.c.bf16 %v1177, %v1175
        %v1292 = vpack.c.bf16 %v1180, %v1178
        %v1293 = vpack.c.bf16 %v1181, %v1179
        %v1294 = vpack.c.bf16 %v1184, %v1182
        %v1295 = vpack.c.bf16 %v1185, %v1183
        %v1296 = vpack.c.bf16 %v1188, %v1186
        %v1297 = vpack.c.bf16 %v1189, %v1187
        %v1298 = vpack.c.bf16 %v1192, %v1190
        %v1299 = vpack.c.bf16 %v1193, %v1191
        %v1300 = vpack.c.bf16 %v1196, %v1194
        %v1301 = vpack.c.bf16 %v1197, %v1195
        %v1302 = vpack.c.bf16 %v1200, %v1198
        %v1303 = vpack.c.bf16 %v1201, %v1199
        %v1304 = vpack.c.bf16 %v1204, %v1202
        %v1305 = vpack.c.bf16 %v1205, %v1203
        %v1306 = vpack.c.bf16 %v1208, %v1206
        %v1307 = vpack.c.bf16 %v1209, %v1207
        %v1308 = vpack.c.bf16 %v1212, %v1210
        %v1309 = vpack.c.bf16 %v1213, %v1211
        %v1310 = vpack.c.bf16 %v1216, %v1214
        %v1311 = vpack.c.bf16 %v1217, %v1215
        %v1312 = vpack.c.bf16 %v1220, %v1218
        %v1313 = vpack.c.bf16 %v1221, %v1219
        %v1314 = vpack.c.bf16 %v1224, %v1222
        %v1315 = vpack.c.bf16 %v1225, %v1223
        %v1316 = vpack.c.bf16 %v1228, %v1226
        %v1317 = vpack.c.bf16 %v1229, %v1227
        %v1318 = vpack.c.bf16 %v1232, %v1230
        %v1319 = vpack.c.bf16 %v1233, %v1231
        %v1320 = vpack.c.bf16 %v1236, %v1234
        %v1321 = vpack.c.bf16 %v1237, %v1235
        %v1322 = vpack.c.bf16 %v1240, %v1238
        %v1323 = vpack.c.bf16 %v1241, %v1239
        %v1324 = vpack.c.bf16 %v1244, %v1242
        %v1325 = vpack.c.bf16 %v1245, %v1243
        %v1326 = vpack.c.bf16 %v1248, %v1246
        %v1327 = vpack.c.bf16 %v1249, %v1247
        %v1328 = vpack.c.bf16 %v1252, %v1250
        %v1329 = vpack.c.bf16 %v1253, %v1251
        %v1330 = vpack.c.bf16 %v1256, %v1254
        %v1331 = vpack.c.bf16 %v1257, %v1255
        %v1332 = vpack.c.bf16 %v1260, %v1258
        %v1333 = vpack.c.bf16 %v1261, %v1259
        %v1334 = vpack.c.bf16 %v1264, %v1262
        %v1335 = vpack.c.bf16 %v1265, %v1263
        %v1336 = vpack.c.bf16 %v1268, %v1266
        %v1337 = vpack.c.bf16 %v1269, %v1267
        %v1338 = vpack.c.bf16 %v1272, %v1270
        %v1339 = vpack.c.bf16 %v1273, %v1271
        %v1340 = vpack.c.bf16 %v1276, %v1274
        %v1341 = vpack.c.bf16 %v1277, %v1275
        %v1342 = vld [vmem:[#allocation7] sm:$0xff]
        %v1343 = vld [vmem:[#allocation7 + $0x8] sm:$0xff]
        %v1344 = vld [vmem:[#allocation7 + $0x10] sm:$0xff]
        %v1345 = vld [vmem:[#allocation7 + $0x18] sm:$0xff]
        %v1346 = vld [vmem:[#allocation7 + $0x20] sm:$0xff]
        %v1347 = vld [vmem:[#allocation7 + $0x28] sm:$0xff]
        %v1348 = vld [vmem:[#allocation7 + $0x30] sm:$0xff]
        %v1349 = vld [vmem:[#allocation7 + $0x38] sm:$0xff]
        %v1350 = vld [vmem:[#allocation7 + $0x40] sm:$0xff]
        %v1351 = vld [vmem:[#allocation7 + $0x48] sm:$0xff]
        %v1352 = vld [vmem:[#allocation7 + $0x50] sm:$0xff]
        %v1353 = vld [vmem:[#allocation7 + $0x58] sm:$0xff]
        %v1354 = vld [vmem:[#allocation7 + $0x60] sm:$0xff]
        %v1355 = vld [vmem:[#allocation7 + $0x68] sm:$0xff]
        %v1356 = vld [vmem:[#allocation7 + $0x70] sm:$0xff]
        %v1357 = vld [vmem:[#allocation7 + $0x78] sm:$0xff]
        %v1358 = vld [vmem:[#allocation7 + $0x80] sm:$0xff]
        %v1359 = vld [vmem:[#allocation7 + $0x88] sm:$0xff]
        %v1360 = vld [vmem:[#allocation7 + $0x90] sm:$0xff]
        %v1361 = vld [vmem:[#allocation7 + $0x98] sm:$0xff]
        %v1362 = vld [vmem:[#allocation7 + $0xa0] sm:$0xff]
        %v1363 = vld [vmem:[#allocation7 + $0xa8] sm:$0xff]
        %v1364 = vld [vmem:[#allocation7 + $0xb0] sm:$0xff]
        %v1365 = vld [vmem:[#allocation7 + $0xb8] sm:$0xff]
        %v1366 = vld [vmem:[#allocation7 + $0xc0] sm:$0xff]
        %v1367 = vld [vmem:[#allocation7 + $0xc8] sm:$0xff]
        %v1368 = vld [vmem:[#allocation7 + $0xd0] sm:$0xff]
        %v1369 = vld [vmem:[#allocation7 + $0xd8] sm:$0xff]
        %v1370 = vld [vmem:[#allocation7 + $0xe0] sm:$0xff]
        %v1371 = vld [vmem:[#allocation7 + $0xe8] sm:$0xff]
        %v1372 = vld [vmem:[#allocation7 + $0xf0] sm:$0xff]
        %v1373 = vld [vmem:[#allocation7 + $0xf8] sm:$0xff]
        %v1406 = vunpack.c.l.b16 %v1342
        %v1407 = vunpack.c.h.b16 %v1342
        %v1408 = vunpack.c.l.b16 %v1343
        %v1409 = vunpack.c.h.b16 %v1343
        %v1410 = vunpack.c.l.b16 %v1344
        %v1411 = vunpack.c.h.b16 %v1344
        %v1412 = vunpack.c.l.b16 %v1345
        %v1413 = vunpack.c.h.b16 %v1345
        %v1414 = vunpack.c.l.b16 %v1346
        %v1415 = vunpack.c.h.b16 %v1346
        %v1416 = vunpack.c.l.b16 %v1347
        %v1417 = vunpack.c.h.b16 %v1347
        %v1418 = vunpack.c.l.b16 %v1348
        %v1419 = vunpack.c.h.b16 %v1348
        %v1420 = vunpack.c.l.b16 %v1349
        %v1421 = vunpack.c.h.b16 %v1349
        %v1422 = vunpack.c.l.b16 %v1350
        %v1423 = vunpack.c.h.b16 %v1350
        %v1424 = vunpack.c.l.b16 %v1351
        %v1425 = vunpack.c.h.b16 %v1351
        %v1426 = vunpack.c.l.b16 %v1352
        %v1427 = vunpack.c.h.b16 %v1352
        %v1428 = vunpack.c.l.b16 %v1353
        %v1429 = vunpack.c.h.b16 %v1353
        %v1430 = vunpack.c.l.b16 %v1354
        %v1431 = vunpack.c.h.b16 %v1354
        %v1432 = vunpack.c.l.b16 %v1355
        %v1433 = vunpack.c.h.b16 %v1355
        %v1434 = vunpack.c.l.b16 %v1356
        %v1435 = vunpack.c.h.b16 %v1356
        %v1436 = vunpack.c.l.b16 %v1357
        %v1437 = vunpack.c.h.b16 %v1357
        %v1438 = vunpack.c.l.b16 %v1358
        %v1439 = vunpack.c.h.b16 %v1358
        %v1440 = vunpack.c.l.b16 %v1359
        %v1441 = vunpack.c.h.b16 %v1359
        %v1442 = vunpack.c.l.b16 %v1360
        %v1443 = vunpack.c.h.b16 %v1360
        %v1444 = vunpack.c.l.b16 %v1361
        %v1445 = vunpack.c.h.b16 %v1361
        %v1446 = vunpack.c.l.b16 %v1362
        %v1447 = vunpack.c.h.b16 %v1362
        %v1448 = vunpack.c.l.b16 %v1363
        %v1449 = vunpack.c.h.b16 %v1363
        %v1450 = vunpack.c.l.b16 %v1364
        %v1451 = vunpack.c.h.b16 %v1364
        %v1452 = vunpack.c.l.b16 %v1365
        %v1453 = vunpack.c.h.b16 %v1365
        %v1454 = vunpack.c.l.b16 %v1366
        %v1455 = vunpack.c.h.b16 %v1366
        %v1456 = vunpack.c.l.b16 %v1367
        %v1457 = vunpack.c.h.b16 %v1367
        %v1458 = vunpack.c.l.b16 %v1368
        %v1459 = vunpack.c.h.b16 %v1368
        %v1460 = vunpack.c.l.b16 %v1369
        %v1461 = vunpack.c.h.b16 %v1369
        %v1462 = vunpack.c.l.b16 %v1370
        %v1463 = vunpack.c.h.b16 %v1370
        %v1464 = vunpack.c.l.b16 %v1371
        %v1465 = vunpack.c.h.b16 %v1371
        %v1466 = vunpack.c.l.b16 %v1372
        %v1467 = vunpack.c.h.b16 %v1372
        %v1468 = vunpack.c.l.b16 %v1373
        %v1469 = vunpack.c.h.b16 %v1373
        %v1470 = vpack.c.b16 %v1408, %v1406
        %v1471 = vpack.c.b16 %v1409, %v1407
        %v1472 = vpack.c.b16 %v1412, %v1410
        %v1473 = vpack.c.b16 %v1413, %v1411
        %v1474 = vpack.c.b16 %v1416, %v1414
        %v1475 = vpack.c.b16 %v1417, %v1415
        %v1476 = vpack.c.b16 %v1420, %v1418
        %v1477 = vpack.c.b16 %v1421, %v1419
        %v1478 = vpack.c.b16 %v1424, %v1422
        %v1479 = vpack.c.b16 %v1425, %v1423
        %v1480 = vpack.c.b16 %v1428, %v1426
        %v1481 = vpack.c.b16 %v1429, %v1427
        %v1482 = vpack.c.b16 %v1432, %v1430
        %v1483 = vpack.c.b16 %v1433, %v1431
        %v1484 = vpack.c.b16 %v1436, %v1434
        %v1485 = vpack.c.b16 %v1437, %v1435
        %v1486 = vpack.c.b16 %v1440, %v1438
        %v1487 = vpack.c.b16 %v1441, %v1439
        %v1488 = vpack.c.b16 %v1444, %v1442
        %v1489 = vpack.c.b16 %v1445, %v1443
        %v1490 = vpack.c.b16 %v1448, %v1446
        %v1491 = vpack.c.b16 %v1449, %v1447
        %v1492 = vpack.c.b16 %v1452, %v1450
        %v1493 = vpack.c.b16 %v1453, %v1451
        %v1494 = vpack.c.b16 %v1456, %v1454
        %v1495 = vpack.c.b16 %v1457, %v1455
        %v1496 = vpack.c.b16 %v1460, %v1458
        %v1497 = vpack.c.b16 %v1461, %v1459
        %v1498 = vpack.c.b16 %v1464, %v1462
        %v1499 = vpack.c.b16 %v1465, %v1463
        %v1500 = vpack.c.b16 %v1468, %v1466
        %v1501 = vpack.c.b16 %v1469, %v1467
        %1534 = vmatprep.subr.bf16.mxu0 %v1485
        %1535 = vmatpush1.bf16.msra.mxu0 %v1484
        %1536 = vmatprep.subr.bf16.mxu0 %v1483
        %1537 = vmatpush1.bf16.msra.mxu0 %v1482
        %1538 = vmatprep.subr.bf16.mxu0 %v1481
        %1539 = vmatpush1.bf16.msra.mxu0 %v1480
        %1540 = vmatprep.subr.bf16.mxu0 %v1479
        %1541 = vmatpush1.bf16.msra.mxu0 %v1478
        %1542 = vmatprep.subr.bf16.mxu0 %v1477
        %1543 = vmatpush1.bf16.msra.mxu0 %v1476
        %1544 = vmatprep.subr.bf16.mxu0 %v1475
        %1545 = vmatpush1.bf16.msra.mxu0 %v1474
        %1546 = vmatprep.subr.bf16.mxu0 %v1473
        %1547 = vmatpush1.bf16.msra.mxu0 %v1472
        %1548 = vmatprep.subr.bf16.mxu0 %v1471
        %1549 = vmatpush1.bf16.msra.mxu0 %v1470
        %1550 = vmatprep.subr.bf16.mxu0 %v1501
        %1551 = vmatpush2.bf16.msra.mxu0 %v1500
        %1552 = vmatprep.subr.bf16.mxu0 %v1499
        %1553 = vmatpush2.bf16.msra.mxu0 %v1498
        %1554 = vmatprep.subr.bf16.mxu0 %v1497
        %1555 = vmatpush2.bf16.msra.mxu0 %v1496
        %1556 = vmatprep.subr.bf16.mxu0 %v1495
        %1557 = vmatpush2.bf16.msra.mxu0 %v1494
        %1558 = vmatprep.subr.bf16.mxu0 %v1493
        %1559 = vmatpush2.bf16.msra.mxu0 %v1492
        %1560 = vmatprep.subr.bf16.mxu0 %v1491
        %1561 = vmatpush2.bf16.msra.mxu0 %v1490
        %1562 = vmatprep.subr.bf16.mxu0 %v1489
        %1563 = vmatpush2.bf16.msra.mxu0 %v1488
        %1564 = vmatprep.subr.bf16.mxu0 %v1487
        %1565 = vmatpush2.bf16.msra.mxu0 %v1486
        %1566 = vmatprep.mubr.bf16.mxu0 %v1279
        %1567 = vmatmul.mubr.bf16.gmra.mxu0 %v1278
        %v1568 = vpop.f32.mrf.mxu0
        %v1569 = vadd.f32 0.0, %v1568
        %v1570 = vpop.f32.mrf.mxu0
        %v1571 = vadd.f32 0.0, %v1570
        %v1572 = vpop.f32.mrf.mxu0
        %v1573 = vadd.f32 0.0, %v1572
        %v1574 = vpop.f32.mrf.mxu0
        %v1575 = vadd.f32 0.0, %v1574
        %1576 = vmatprep.mubr.bf16.mxu0 %v1281
        %1577 = vmatmul.mubr.bf16.gmra.mxu0 %v1280
        %v1578 = vpop.f32.mrf.mxu0
        %v1579 = vadd.f32 0.0, %v1578
        %v1580 = vpop.f32.mrf.mxu0
        %v1581 = vadd.f32 0.0, %v1580
        %v1582 = vpop.f32.mrf.mxu0
        %v1583 = vadd.f32 0.0, %v1582
        %v1584 = vpop.f32.mrf.mxu0
        %v1585 = vadd.f32 0.0, %v1584
        %1586 = vmatprep.mubr.bf16.mxu0 %v1283
        %1587 = vmatmul.mubr.bf16.gmra.mxu0 %v1282
        %v1588 = vpop.f32.mrf.mxu0
        %v1589 = vadd.f32 0.0, %v1588
        %v1590 = vpop.f32.mrf.mxu0
        %v1591 = vadd.f32 0.0, %v1590
        %v1592 = vpop.f32.mrf.mxu0
        %v1593 = vadd.f32 0.0, %v1592
        %v1594 = vpop.f32.mrf.mxu0
        %v1595 = vadd.f32 0.0, %v1594
        %1596 = vmatprep.mubr.bf16.mxu0 %v1285
        %1597 = vmatmul.mubr.bf16.gmra.mxu0 %v1284
        %v1598 = vpop.f32.mrf.mxu0
        %v1599 = vadd.f32 0.0, %v1598
        %v1600 = vpop.f32.mrf.mxu0
        %v1601 = vadd.f32 0.0, %v1600
        %v1602 = vpop.f32.mrf.mxu0
        %v1603 = vadd.f32 0.0, %v1602
        %v1604 = vpop.f32.mrf.mxu0
        %v1605 = vadd.f32 0.0, %v1604
        %1606 = vmatprep.mubr.bf16.mxu0 %v1287
        %1607 = vmatmul.mubr.bf16.gmra.mxu0 %v1286
        %v1608 = vpop.f32.mrf.mxu0
        %v1609 = vadd.f32 0.0, %v1608
        %v1610 = vpop.f32.mrf.mxu0
        %v1611 = vadd.f32 0.0, %v1610
        %v1612 = vpop.f32.mrf.mxu0
        %v1613 = vadd.f32 0.0, %v1612
        %v1614 = vpop.f32.mrf.mxu0
        %v1615 = vadd.f32 0.0, %v1614
        %1616 = vmatprep.mubr.bf16.mxu0 %v1289
        %1617 = vmatmul.mubr.bf16.gmra.mxu0 %v1288
        %v1618 = vpop.f32.mrf.mxu0
        %v1619 = vadd.f32 0.0, %v1618
        %v1620 = vpop.f32.mrf.mxu0
        %v1621 = vadd.f32 0.0, %v1620
        %v1622 = vpop.f32.mrf.mxu0
        %v1623 = vadd.f32 0.0, %v1622
        %v1624 = vpop.f32.mrf.mxu0
        %v1625 = vadd.f32 0.0, %v1624
        %1626 = vmatprep.mubr.bf16.mxu0 %v1291
        %1627 = vmatmul.mubr.bf16.gmra.mxu0 %v1290
        %v1628 = vpop.f32.mrf.mxu0
        %v1629 = vadd.f32 0.0, %v1628
        %v1630 = vpop.f32.mrf.mxu0
        %v1631 = vadd.f32 0.0, %v1630
        %v1632 = vpop.f32.mrf.mxu0
        %v1633 = vadd.f32 0.0, %v1632
        %v1634 = vpop.f32.mrf.mxu0
        %v1635 = vadd.f32 0.0, %v1634
        %1636 = vmatprep.mubr.bf16.mxu0 %v1293
        %1637 = vmatmul.mubr.bf16.gmra.mxu0 %v1292
        %v1638 = vpop.f32.mrf.mxu0
        %v1639 = vadd.f32 0.0, %v1638
        %v1640 = vpop.f32.mrf.mxu0
        %v1641 = vadd.f32 0.0, %v1640
        %v1642 = vpop.f32.mrf.mxu0
        %v1643 = vadd.f32 0.0, %v1642
        %v1644 = vpop.f32.mrf.mxu0
        %v1645 = vadd.f32 0.0, %v1644
        %1646 = vmatprep.mubr.bf16.mxu0 %v1295
        %1647 = vmatmul.mubr.bf16.gmra.mxu0 %v1294
        %v1648 = vpop.f32.mrf.mxu0
        %v1649 = vadd.f32 0.0, %v1648
        %v1650 = vpop.f32.mrf.mxu0
        %v1651 = vadd.f32 0.0, %v1650
        %v1652 = vpop.f32.mrf.mxu0
        %v1653 = vadd.f32 0.0, %v1652
        %v1654 = vpop.f32.mrf.mxu0
        %v1655 = vadd.f32 0.0, %v1654
        %1656 = vmatprep.mubr.bf16.mxu0 %v1297
        %1657 = vmatmul.mubr.bf16.gmra.mxu0 %v1296
        %v1658 = vpop.f32.mrf.mxu0
        %v1659 = vadd.f32 0.0, %v1658
        %v1660 = vpop.f32.mrf.mxu0
        %v1661 = vadd.f32 0.0, %v1660
        %v1662 = vpop.f32.mrf.mxu0
        %v1663 = vadd.f32 0.0, %v1662
        %v1664 = vpop.f32.mrf.mxu0
        %v1665 = vadd.f32 0.0, %v1664
        %1666 = vmatprep.mubr.bf16.mxu0 %v1299
        %1667 = vmatmul.mubr.bf16.gmra.mxu0 %v1298
        %v1668 = vpop.f32.mrf.mxu0
        %v1669 = vadd.f32 0.0, %v1668
        %v1670 = vpop.f32.mrf.mxu0
        %v1671 = vadd.f32 0.0, %v1670
        %v1672 = vpop.f32.mrf.mxu0
        %v1673 = vadd.f32 0.0, %v1672
        %v1674 = vpop.f32.mrf.mxu0
        %v1675 = vadd.f32 0.0, %v1674
        %1676 = vmatprep.mubr.bf16.mxu0 %v1301
        %1677 = vmatmul.mubr.bf16.gmra.mxu0 %v1300
        %v1678 = vpop.f32.mrf.mxu0
        %v1679 = vadd.f32 0.0, %v1678
        %v1680 = vpop.f32.mrf.mxu0
        %v1681 = vadd.f32 0.0, %v1680
        %v1682 = vpop.f32.mrf.mxu0
        %v1683 = vadd.f32 0.0, %v1682
        %v1684 = vpop.f32.mrf.mxu0
        %v1685 = vadd.f32 0.0, %v1684
        %1686 = vmatprep.mubr.bf16.mxu0 %v1303
        %1687 = vmatmul.mubr.bf16.gmra.mxu0 %v1302
        %v1688 = vpop.f32.mrf.mxu0
        %v1689 = vadd.f32 0.0, %v1688
        %v1690 = vpop.f32.mrf.mxu0
        %v1691 = vadd.f32 0.0, %v1690
        %v1692 = vpop.f32.mrf.mxu0
        %v1693 = vadd.f32 0.0, %v1692
        %v1694 = vpop.f32.mrf.mxu0
        %v1695 = vadd.f32 0.0, %v1694
        %1696 = vmatprep.mubr.bf16.mxu0 %v1305
        %1697 = vmatmul.mubr.bf16.gmra.mxu0 %v1304
        %v1698 = vpop.f32.mrf.mxu0
        %v1699 = vadd.f32 0.0, %v1698
        %v1700 = vpop.f32.mrf.mxu0
        %v1701 = vadd.f32 0.0, %v1700
        %v1702 = vpop.f32.mrf.mxu0
        %v1703 = vadd.f32 0.0, %v1702
        %v1704 = vpop.f32.mrf.mxu0
        %v1705 = vadd.f32 0.0, %v1704
        %1706 = vmatprep.mubr.bf16.mxu0 %v1307
        %1707 = vmatmul.mubr.bf16.gmra.mxu0 %v1306
        %v1708 = vpop.f32.mrf.mxu0
        %v1709 = vadd.f32 0.0, %v1708
        %v1710 = vpop.f32.mrf.mxu0
        %v1711 = vadd.f32 0.0, %v1710
        %v1712 = vpop.f32.mrf.mxu0
        %v1713 = vadd.f32 0.0, %v1712
        %v1714 = vpop.f32.mrf.mxu0
        %v1715 = vadd.f32 0.0, %v1714
        %1716 = vmatprep.mubr.bf16.mxu0 %v1309
        %1717 = vmatmul.mubr.bf16.gmra.mxu0 %v1308
        %v1718 = vpop.f32.mrf.mxu0
        %v1719 = vadd.f32 0.0, %v1718
        %v1720 = vpop.f32.mrf.mxu0
        %v1721 = vadd.f32 0.0, %v1720
        %v1722 = vpop.f32.mrf.mxu0
        %v1723 = vadd.f32 0.0, %v1722
        %v1724 = vpop.f32.mrf.mxu0
        %v1725 = vadd.f32 0.0, %v1724
        %1726 = vmatprep.mubr.bf16.mxu0 %v1311
        %1727 = vmatmul.mubr.bf16.gmra.mxu0 %v1310
        %v1728 = vpop.f32.mrf.mxu0
        %v1729 = vadd.f32 0.0, %v1728
        %v1730 = vpop.f32.mrf.mxu0
        %v1731 = vadd.f32 0.0, %v1730
        %v1732 = vpop.f32.mrf.mxu0
        %v1733 = vadd.f32 0.0, %v1732
        %v1734 = vpop.f32.mrf.mxu0
        %v1735 = vadd.f32 0.0, %v1734
        %1736 = vmatprep.mubr.bf16.mxu0 %v1313
        %1737 = vmatmul.mubr.bf16.gmra.mxu0 %v1312
        %v1738 = vpop.f32.mrf.mxu0
        %v1739 = vadd.f32 0.0, %v1738
        %v1740 = vpop.f32.mrf.mxu0
        %v1741 = vadd.f32 0.0, %v1740
        %v1742 = vpop.f32.mrf.mxu0
        %v1743 = vadd.f32 0.0, %v1742
        %v1744 = vpop.f32.mrf.mxu0
        %v1745 = vadd.f32 0.0, %v1744
        %1746 = vmatprep.mubr.bf16.mxu0 %v1315
        %1747 = vmatmul.mubr.bf16.gmra.mxu0 %v1314
        %v1748 = vpop.f32.mrf.mxu0
        %v1749 = vadd.f32 0.0, %v1748
        %v1750 = vpop.f32.mrf.mxu0
        %v1751 = vadd.f32 0.0, %v1750
        %v1752 = vpop.f32.mrf.mxu0
        %v1753 = vadd.f32 0.0, %v1752
        %v1754 = vpop.f32.mrf.mxu0
        %v1755 = vadd.f32 0.0, %v1754
        %1756 = vmatprep.mubr.bf16.mxu0 %v1317
        %1757 = vmatmul.mubr.bf16.gmra.mxu0 %v1316
        %v1758 = vpop.f32.mrf.mxu0
        %v1759 = vadd.f32 0.0, %v1758
        %v1760 = vpop.f32.mrf.mxu0
        %v1761 = vadd.f32 0.0, %v1760
        %v1762 = vpop.f32.mrf.mxu0
        %v1763 = vadd.f32 0.0, %v1762
        %v1764 = vpop.f32.mrf.mxu0
        %v1765 = vadd.f32 0.0, %v1764
        %1766 = vmatprep.mubr.bf16.mxu0 %v1319
        %1767 = vmatmul.mubr.bf16.gmra.mxu0 %v1318
        %v1768 = vpop.f32.mrf.mxu0
        %v1769 = vadd.f32 0.0, %v1768
        %v1770 = vpop.f32.mrf.mxu0
        %v1771 = vadd.f32 0.0, %v1770
        %v1772 = vpop.f32.mrf.mxu0
        %v1773 = vadd.f32 0.0, %v1772
        %v1774 = vpop.f32.mrf.mxu0
        %v1775 = vadd.f32 0.0, %v1774
        %1776 = vmatprep.mubr.bf16.mxu0 %v1321
        %1777 = vmatmul.mubr.bf16.gmra.mxu0 %v1320
        %v1778 = vpop.f32.mrf.mxu0
        %v1779 = vadd.f32 0.0, %v1778
        %v1780 = vpop.f32.mrf.mxu0
        %v1781 = vadd.f32 0.0, %v1780
        %v1782 = vpop.f32.mrf.mxu0
        %v1783 = vadd.f32 0.0, %v1782
        %v1784 = vpop.f32.mrf.mxu0
        %v1785 = vadd.f32 0.0, %v1784
        %1786 = vmatprep.mubr.bf16.mxu0 %v1323
        %1787 = vmatmul.mubr.bf16.gmra.mxu0 %v1322
        %v1788 = vpop.f32.mrf.mxu0
        %v1789 = vadd.f32 0.0, %v1788
        %v1790 = vpop.f32.mrf.mxu0
        %v1791 = vadd.f32 0.0, %v1790
        %v1792 = vpop.f32.mrf.mxu0
        %v1793 = vadd.f32 0.0, %v1792
        %v1794 = vpop.f32.mrf.mxu0
        %v1795 = vadd.f32 0.0, %v1794
        %1796 = vmatprep.mubr.bf16.mxu0 %v1325
        %1797 = vmatmul.mubr.bf16.gmra.mxu0 %v1324
        %v1798 = vpop.f32.mrf.mxu0
        %v1799 = vadd.f32 0.0, %v1798
        %v1800 = vpop.f32.mrf.mxu0
        %v1801 = vadd.f32 0.0, %v1800
        %v1802 = vpop.f32.mrf.mxu0
        %v1803 = vadd.f32 0.0, %v1802
        %v1804 = vpop.f32.mrf.mxu0
        %v1805 = vadd.f32 0.0, %v1804
        %1806 = vmatprep.mubr.bf16.mxu0 %v1327
        %1807 = vmatmul.mubr.bf16.gmra.mxu0 %v1326
        %v1808 = vpop.f32.mrf.mxu0
        %v1809 = vadd.f32 0.0, %v1808
        %v1810 = vpop.f32.mrf.mxu0
        %v1811 = vadd.f32 0.0, %v1810
        %v1812 = vpop.f32.mrf.mxu0
        %v1813 = vadd.f32 0.0, %v1812
        %v1814 = vpop.f32.mrf.mxu0
        %v1815 = vadd.f32 0.0, %v1814
        %1816 = vmatprep.mubr.bf16.mxu0 %v1329
        %1817 = vmatmul.mubr.bf16.gmra.mxu0 %v1328
        %v1818 = vpop.f32.mrf.mxu0
        %v1819 = vadd.f32 0.0, %v1818
        %v1820 = vpop.f32.mrf.mxu0
        %v1821 = vadd.f32 0.0, %v1820
        %v1822 = vpop.f32.mrf.mxu0
        %v1823 = vadd.f32 0.0, %v1822
        %v1824 = vpop.f32.mrf.mxu0
        %v1825 = vadd.f32 0.0, %v1824
        %1826 = vmatprep.mubr.bf16.mxu0 %v1331
        %1827 = vmatmul.mubr.bf16.gmra.mxu0 %v1330
        %v1828 = vpop.f32.mrf.mxu0
        %v1829 = vadd.f32 0.0, %v1828
        %v1830 = vpop.f32.mrf.mxu0
        %v1831 = vadd.f32 0.0, %v1830
        %v1832 = vpop.f32.mrf.mxu0
        %v1833 = vadd.f32 0.0, %v1832
        %v1834 = vpop.f32.mrf.mxu0
        %v1835 = vadd.f32 0.0, %v1834
        %1836 = vmatprep.mubr.bf16.mxu0 %v1333
        %1837 = vmatmul.mubr.bf16.gmra.mxu0 %v1332
        %v1838 = vpop.f32.mrf.mxu0
        %v1839 = vadd.f32 0.0, %v1838
        %v1840 = vpop.f32.mrf.mxu0
        %v1841 = vadd.f32 0.0, %v1840
        %v1842 = vpop.f32.mrf.mxu0
        %v1843 = vadd.f32 0.0, %v1842
        %v1844 = vpop.f32.mrf.mxu0
        %v1845 = vadd.f32 0.0, %v1844
        %1846 = vmatprep.mubr.bf16.mxu0 %v1335
        %1847 = vmatmul.mubr.bf16.gmra.mxu0 %v1334
        %v1848 = vpop.f32.mrf.mxu0
        %v1849 = vadd.f32 0.0, %v1848
        %v1850 = vpop.f32.mrf.mxu0
        %v1851 = vadd.f32 0.0, %v1850
        %v1852 = vpop.f32.mrf.mxu0
        %v1853 = vadd.f32 0.0, %v1852
        %v1854 = vpop.f32.mrf.mxu0
        %v1855 = vadd.f32 0.0, %v1854
        %1856 = vmatprep.mubr.bf16.mxu0 %v1337
        %1857 = vmatmul.mubr.bf16.gmra.mxu0 %v1336
        %v1858 = vpop.f32.mrf.mxu0
        %v1859 = vadd.f32 0.0, %v1858
        %v1860 = vpop.f32.mrf.mxu0
        %v1861 = vadd.f32 0.0, %v1860
        %v1862 = vpop.f32.mrf.mxu0
        %v1863 = vadd.f32 0.0, %v1862
        %v1864 = vpop.f32.mrf.mxu0
        %v1865 = vadd.f32 0.0, %v1864
        %1866 = vmatprep.mubr.bf16.mxu0 %v1339
        %1867 = vmatmul.mubr.bf16.gmra.mxu0 %v1338
        %v1868 = vpop.f32.mrf.mxu0
        %v1869 = vadd.f32 0.0, %v1868
        %v1870 = vpop.f32.mrf.mxu0
        %v1871 = vadd.f32 0.0, %v1870
        %v1872 = vpop.f32.mrf.mxu0
        %v1873 = vadd.f32 0.0, %v1872
        %v1874 = vpop.f32.mrf.mxu0
        %v1875 = vadd.f32 0.0, %v1874
        %1876 = vmatprep.mubr.bf16.mxu0 %v1341
        %1877 = vmatmul.mubr.bf16.gmra.mxu0 %v1340
        %v1878 = vpop.f32.mrf.mxu0
        %v1879 = vadd.f32 0.0, %v1878
        %v1880 = vpop.f32.mrf.mxu0
        %v1881 = vadd.f32 0.0, %v1880
        %v1882 = vpop.f32.mrf.mxu0
        %v1883 = vadd.f32 0.0, %v1882
        %v1884 = vpop.f32.mrf.mxu0
        %v1885 = vadd.f32 0.0, %v1884
        %1886 = vdwg.mxu0
        %v1887 = vmax.f32 %v1569, 0.0
        %v1888 = vmax.f32 %v1571, 0.0
        %v1889 = vmax.f32 %v1573, 0.0
        %v1890 = vmax.f32 %v1575, 0.0
        %v1891 = vmax.f32 %v1579, 0.0
        %v1892 = vmax.f32 %v1581, 0.0
        %v1893 = vmax.f32 %v1583, 0.0
        %v1894 = vmax.f32 %v1585, 0.0
        %v1895 = vmax.f32 %v1589, 0.0
        %v1896 = vmax.f32 %v1591, 0.0
        %v1897 = vmax.f32 %v1593, 0.0
        %v1898 = vmax.f32 %v1595, 0.0
        %v1899 = vmax.f32 %v1599, 0.0
        %v1900 = vmax.f32 %v1601, 0.0
        %v1901 = vmax.f32 %v1603, 0.0
        %v1902 = vmax.f32 %v1605, 0.0
        %v1903 = vmax.f32 %v1609, 0.0
        %v1904 = vmax.f32 %v1611, 0.0
        %v1905 = vmax.f32 %v1613, 0.0
        %v1906 = vmax.f32 %v1615, 0.0
        %v1907 = vmax.f32 %v1619, 0.0
        %v1908 = vmax.f32 %v1621, 0.0
        %v1909 = vmax.f32 %v1623, 0.0
        %v1910 = vmax.f32 %v1625, 0.0
        %v1911 = vmax.f32 %v1629, 0.0
        %v1912 = vmax.f32 %v1631, 0.0
        %v1913 = vmax.f32 %v1633, 0.0
        %v1914 = vmax.f32 %v1635, 0.0
        %v1915 = vmax.f32 %v1639, 0.0
        %v1916 = vmax.f32 %v1641, 0.0
        %v1917 = vmax.f32 %v1643, 0.0
        %v1918 = vmax.f32 %v1645, 0.0
        %v1919 = vmax.f32 %v1649, 0.0
        %v1920 = vmax.f32 %v1651, 0.0
        %v1921 = vmax.f32 %v1653, 0.0
        %v1922 = vmax.f32 %v1655, 0.0
        %v1923 = vmax.f32 %v1659, 0.0
        %v1924 = vmax.f32 %v1661, 0.0
        %v1925 = vmax.f32 %v1663, 0.0
        %v1926 = vmax.f32 %v1665, 0.0
        %v1927 = vmax.f32 %v1669, 0.0
        %v1928 = vmax.f32 %v1671, 0.0
        %v1929 = vmax.f32 %v1673, 0.0
        %v1930 = vmax.f32 %v1675, 0.0
        %v1931 = vmax.f32 %v1679, 0.0
        %v1932 = vmax.f32 %v1681, 0.0
        %v1933 = vmax.f32 %v1683, 0.0
        %v1934 = vmax.f32 %v1685, 0.0
        %v1935 = vmax.f32 %v1689, 0.0
        %v1936 = vmax.f32 %v1691, 0.0
        %v1937 = vmax.f32 %v1693, 0.0
        %v1938 = vmax.f32 %v1695, 0.0
        %v1939 = vmax.f32 %v1699, 0.0
        %v1940 = vmax.f32 %v1701, 0.0
        %v1941 = vmax.f32 %v1703, 0.0
        %v1942 = vmax.f32 %v1705, 0.0
        %v1943 = vmax.f32 %v1709, 0.0
        %v1944 = vmax.f32 %v1711, 0.0
        %v1945 = vmax.f32 %v1713, 0.0
        %v1946 = vmax.f32 %v1715, 0.0
        %v1947 = vmax.f32 %v1719, 0.0
        %v1948 = vmax.f32 %v1721, 0.0
        %v1949 = vmax.f32 %v1723, 0.0
        %v1950 = vmax.f32 %v1725, 0.0
        %v1951 = vmax.f32 %v1729, 0.0
        %v1952 = vmax.f32 %v1731, 0.0
        %v1953 = vmax.f32 %v1733, 0.0
        %v1954 = vmax.f32 %v1735, 0.0
        %v1955 = vmax.f32 %v1739, 0.0
        %v1956 = vmax.f32 %v1741, 0.0
        %v1957 = vmax.f32 %v1743, 0.0
        %v1958 = vmax.f32 %v1745, 0.0
        %v1959 = vmax.f32 %v1749, 0.0
        %v1960 = vmax.f32 %v1751, 0.0
        %v1961 = vmax.f32 %v1753, 0.0
        %v1962 = vmax.f32 %v1755, 0.0
        %v1963 = vmax.f32 %v1759, 0.0
        %v1964 = vmax.f32 %v1761, 0.0
        %v1965 = vmax.f32 %v1763, 0.0
        %v1966 = vmax.f32 %v1765, 0.0
        %v1967 = vmax.f32 %v1769, 0.0
        %v1968 = vmax.f32 %v1771, 0.0
        %v1969 = vmax.f32 %v1773, 0.0
        %v1970 = vmax.f32 %v1775, 0.0
        %v1971 = vmax.f32 %v1779, 0.0
        %v1972 = vmax.f32 %v1781, 0.0
        %v1973 = vmax.f32 %v1783, 0.0
        %v1974 = vmax.f32 %v1785, 0.0
        %v1975 = vmax.f32 %v1789, 0.0
        %v1976 = vmax.f32 %v1791, 0.0
        %v1977 = vmax.f32 %v1793, 0.0
        %v1978 = vmax.f32 %v1795, 0.0
        %v1979 = vmax.f32 %v1799, 0.0
        %v1980 = vmax.f32 %v1801, 0.0
        %v1981 = vmax.f32 %v1803, 0.0
        %v1982 = vmax.f32 %v1805, 0.0
        %v1983 = vmax.f32 %v1809, 0.0
        %v1984 = vmax.f32 %v1811, 0.0
        %v1985 = vmax.f32 %v1813, 0.0
        %v1986 = vmax.f32 %v1815, 0.0
        %v1987 = vmax.f32 %v1819, 0.0
        %v1988 = vmax.f32 %v1821, 0.0
        %v1989 = vmax.f32 %v1823, 0.0
        %v1990 = vmax.f32 %v1825, 0.0
        %v1991 = vmax.f32 %v1829, 0.0
        %v1992 = vmax.f32 %v1831, 0.0
        %v1993 = vmax.f32 %v1833, 0.0
        %v1994 = vmax.f32 %v1835, 0.0
        %v1995 = vmax.f32 %v1839, 0.0
        %v1996 = vmax.f32 %v1841, 0.0
        %v1997 = vmax.f32 %v1843, 0.0
        %v1998 = vmax.f32 %v1845, 0.0
        %v1999 = vmax.f32 %v1849, 0.0
        %v2000 = vmax.f32 %v1851, 0.0
        %v2001 = vmax.f32 %v1853, 0.0
        %v2002 = vmax.f32 %v1855, 0.0
        %v2003 = vmax.f32 %v1859, 0.0
        %v2004 = vmax.f32 %v1861, 0.0
        %v2005 = vmax.f32 %v1863, 0.0
        %v2006 = vmax.f32 %v1865, 0.0
        %v2007 = vmax.f32 %v1869, 0.0
        %v2008 = vmax.f32 %v1871, 0.0
        %v2009 = vmax.f32 %v1873, 0.0
        %v2010 = vmax.f32 %v1875, 0.0
        %v2011 = vmax.f32 %v1879, 0.0
        %v2012 = vmax.f32 %v1881, 0.0
        %v2013 = vmax.f32 %v1883, 0.0
        %v2014 = vmax.f32 %v1885, 0.0
        %v2015 = vunpack.c.l.bf16 %v221
        %v2016 = vunpack.c.h.bf16 %v221
        %v2017 = vunpack.c.l.bf16 %v222
        %v2018 = vunpack.c.h.bf16 %v222
        %v2019 = vunpack.c.l.bf16 %v223
        %v2020 = vunpack.c.h.bf16 %v223
        %v2021 = vunpack.c.l.bf16 %v224
        %v2022 = vunpack.c.h.bf16 %v224
        %v2023 = vunpack.c.l.bf16 %v225
        %v2024 = vunpack.c.h.bf16 %v225
        %v2025 = vunpack.c.l.bf16 %v226
        %v2026 = vunpack.c.h.bf16 %v226
        %v2027 = vunpack.c.l.bf16 %v227
        %v2028 = vunpack.c.h.bf16 %v227
        %v2029 = vunpack.c.l.bf16 %v228
        %v2030 = vunpack.c.h.bf16 %v228
        %v2031 = vunpack.c.l.bf16 %v229
        %v2032 = vunpack.c.h.bf16 %v229
        %v2033 = vunpack.c.l.bf16 %v230
        %v2034 = vunpack.c.h.bf16 %v230
        %v2035 = vunpack.c.l.bf16 %v231
        %v2036 = vunpack.c.h.bf16 %v231
        %v2037 = vunpack.c.l.bf16 %v232
        %v2038 = vunpack.c.h.bf16 %v232
        %v2039 = vunpack.c.l.bf16 %v233
        %v2040 = vunpack.c.h.bf16 %v233
        %v2041 = vunpack.c.l.bf16 %v234
        %v2042 = vunpack.c.h.bf16 %v234
        %v2043 = vunpack.c.l.bf16 %v235
        %v2044 = vunpack.c.h.bf16 %v235
        %v2045 = vunpack.c.l.bf16 %v236
        %v2046 = vunpack.c.h.bf16 %v236
        %v2047 = vunpack.c.l.bf16 %v237
        %v2048 = vunpack.c.h.bf16 %v237
        %v2049 = vunpack.c.l.bf16 %v238
        %v2050 = vunpack.c.h.bf16 %v238
        %v2051 = vunpack.c.l.bf16 %v239
        %v2052 = vunpack.c.h.bf16 %v239
        %v2053 = vunpack.c.l.bf16 %v240
        %v2054 = vunpack.c.h.bf16 %v240
        %v2055 = vunpack.c.l.bf16 %v241
        %v2056 = vunpack.c.h.bf16 %v241
        %v2057 = vunpack.c.l.bf16 %v242
        %v2058 = vunpack.c.h.bf16 %v242
        %v2059 = vunpack.c.l.bf16 %v243
        %v2060 = vunpack.c.h.bf16 %v243
        %v2061 = vunpack.c.l.bf16 %v244
        %v2062 = vunpack.c.h.bf16 %v244
        %v2063 = vunpack.c.l.bf16 %v245
        %v2064 = vunpack.c.h.bf16 %v245
        %v2065 = vunpack.c.l.bf16 %v246
        %v2066 = vunpack.c.h.bf16 %v246
        %v2067 = vunpack.c.l.bf16 %v247
        %v2068 = vunpack.c.h.bf16 %v247
        %v2069 = vunpack.c.l.bf16 %v248
        %v2070 = vunpack.c.h.bf16 %v248
        %v2071 = vunpack.c.l.bf16 %v249
        %v2072 = vunpack.c.h.bf16 %v249
        %v2073 = vunpack.c.l.bf16 %v250
        %v2074 = vunpack.c.h.bf16 %v250
        %v2075 = vunpack.c.l.bf16 %v251
        %v2076 = vunpack.c.h.bf16 %v251
        %v2077 = vunpack.c.l.bf16 %v252
        %v2078 = vunpack.c.h.bf16 %v252
        %v2079 = vunpack.c.l.bf16 %v253
        %v2080 = vunpack.c.h.bf16 %v253
        %v2081 = vunpack.c.l.bf16 %v254
        %v2082 = vunpack.c.h.bf16 %v254
        %v2083 = vunpack.c.l.bf16 %v255
        %v2084 = vunpack.c.h.bf16 %v255
        %v2085 = vunpack.c.l.bf16 %v256
        %v2086 = vunpack.c.h.bf16 %v256
        %v2087 = vunpack.c.l.bf16 %v257
        %v2088 = vunpack.c.h.bf16 %v257
        %v2089 = vunpack.c.l.bf16 %v258
        %v2090 = vunpack.c.h.bf16 %v258
        %v2091 = vunpack.c.l.bf16 %v259
        %v2092 = vunpack.c.h.bf16 %v259
        %v2093 = vunpack.c.l.bf16 %v260
        %v2094 = vunpack.c.h.bf16 %v260
        %v2095 = vunpack.c.l.bf16 %v261
        %v2096 = vunpack.c.h.bf16 %v261
        %v2097 = vunpack.c.l.bf16 %v262
        %v2098 = vunpack.c.h.bf16 %v262
        %v2099 = vunpack.c.l.bf16 %v263
        %v2100 = vunpack.c.h.bf16 %v263
        %v2101 = vunpack.c.l.bf16 %v264
        %v2102 = vunpack.c.h.bf16 %v264
        %v2103 = vunpack.c.l.bf16 %v265
        %v2104 = vunpack.c.h.bf16 %v265
        %v2105 = vunpack.c.l.bf16 %v266
        %v2106 = vunpack.c.h.bf16 %v266
        %v2107 = vunpack.c.l.bf16 %v267
        %v2108 = vunpack.c.h.bf16 %v267
        %v2109 = vunpack.c.l.bf16 %v268
        %v2110 = vunpack.c.h.bf16 %v268
        %v2111 = vunpack.c.l.bf16 %v269
        %v2112 = vunpack.c.h.bf16 %v269
        %v2113 = vunpack.c.l.bf16 %v270
        %v2114 = vunpack.c.h.bf16 %v270
        %v2115 = vunpack.c.l.bf16 %v271
        %v2116 = vunpack.c.h.bf16 %v271
        %v2117 = vunpack.c.l.bf16 %v272
        %v2118 = vunpack.c.h.bf16 %v272
        %v2119 = vunpack.c.l.bf16 %v273
        %v2120 = vunpack.c.h.bf16 %v273
        %v2121 = vunpack.c.l.bf16 %v274
        %v2122 = vunpack.c.h.bf16 %v274
        %v2123 = vunpack.c.l.bf16 %v275
        %v2124 = vunpack.c.h.bf16 %v275
        %v2125 = vunpack.c.l.bf16 %v276
        %v2126 = vunpack.c.h.bf16 %v276
        %v2127 = vunpack.c.l.bf16 %v277
        %v2128 = vunpack.c.h.bf16 %v277
        %v2129 = vunpack.c.l.bf16 %v278
        %v2130 = vunpack.c.h.bf16 %v278
        %v2131 = vunpack.c.l.bf16 %v279
        %v2132 = vunpack.c.h.bf16 %v279
        %v2133 = vunpack.c.l.bf16 %v280
        %v2134 = vunpack.c.h.bf16 %v280
        %v2135 = vunpack.c.l.bf16 %v281
        %v2136 = vunpack.c.h.bf16 %v281
        %v2137 = vunpack.c.l.bf16 %v282
        %v2138 = vunpack.c.h.bf16 %v282
        %v2139 = vunpack.c.l.bf16 %v283
        %v2140 = vunpack.c.h.bf16 %v283
        %v2141 = vunpack.c.l.bf16 %v284
        %v2142 = vunpack.c.h.bf16 %v284
        %v2143 = vadd.f32 %v2015, %v1887
        %v2144 = vadd.f32 %v2016, %v1888
        %v2145 = vadd.f32 %v2017, %v1889
        %v2146 = vadd.f32 %v2018, %v1890
        %v2147 = vadd.f32 %v2019, %v1891
        %v2148 = vadd.f32 %v2020, %v1892
        %v2149 = vadd.f32 %v2021, %v1893
        %v2150 = vadd.f32 %v2022, %v1894
        %v2151 = vadd.f32 %v2023, %v1895
        %v2152 = vadd.f32 %v2024, %v1896
        %v2153 = vadd.f32 %v2025, %v1897
        %v2154 = vadd.f32 %v2026, %v1898
        %v2155 = vadd.f32 %v2027, %v1899
        %v2156 = vadd.f32 %v2028, %v1900
        %v2157 = vadd.f32 %v2029, %v1901
        %v2158 = vadd.f32 %v2030, %v1902
        %v2159 = vadd.f32 %v2031, %v1903
        %v2160 = vadd.f32 %v2032, %v1904
        %v2161 = vadd.f32 %v2033, %v1905
        %v2162 = vadd.f32 %v2034, %v1906
        %v2163 = vadd.f32 %v2035, %v1907
        %v2164 = vadd.f32 %v2036, %v1908
        %v2165 = vadd.f32 %v2037, %v1909
        %v2166 = vadd.f32 %v2038, %v1910
        %v2167 = vadd.f32 %v2039, %v1911
        %v2168 = vadd.f32 %v2040, %v1912
        %v2169 = vadd.f32 %v2041, %v1913
        %v2170 = vadd.f32 %v2042, %v1914
        %v2171 = vadd.f32 %v2043, %v1915
        %v2172 = vadd.f32 %v2044, %v1916
        %v2173 = vadd.f32 %v2045, %v1917
        %v2174 = vadd.f32 %v2046, %v1918
        %v2175 = vadd.f32 %v2047, %v1919
        %v2176 = vadd.f32 %v2048, %v1920
        %v2177 = vadd.f32 %v2049, %v1921
        %v2178 = vadd.f32 %v2050, %v1922
        %v2179 = vadd.f32 %v2051, %v1923
        %v2180 = vadd.f32 %v2052, %v1924
        %v2181 = vadd.f32 %v2053, %v1925
        %v2182 = vadd.f32 %v2054, %v1926
        %v2183 = vadd.f32 %v2055, %v1927
        %v2184 = vadd.f32 %v2056, %v1928
        %v2185 = vadd.f32 %v2057, %v1929
        %v2186 = vadd.f32 %v2058, %v1930
        %v2187 = vadd.f32 %v2059, %v1931
        %v2188 = vadd.f32 %v2060, %v1932
        %v2189 = vadd.f32 %v2061, %v1933
        %v2190 = vadd.f32 %v2062, %v1934
        %v2191 = vadd.f32 %v2063, %v1935
        %v2192 = vadd.f32 %v2064, %v1936
        %v2193 = vadd.f32 %v2065, %v1937
        %v2194 = vadd.f32 %v2066, %v1938
        %v2195 = vadd.f32 %v2067, %v1939
        %v2196 = vadd.f32 %v2068, %v1940
        %v2197 = vadd.f32 %v2069, %v1941
        %v2198 = vadd.f32 %v2070, %v1942
        %v2199 = vadd.f32 %v2071, %v1943
        %v2200 = vadd.f32 %v2072, %v1944
        %v2201 = vadd.f32 %v2073, %v1945
        %v2202 = vadd.f32 %v2074, %v1946
        %v2203 = vadd.f32 %v2075, %v1947
        %v2204 = vadd.f32 %v2076, %v1948
        %v2205 = vadd.f32 %v2077, %v1949
        %v2206 = vadd.f32 %v2078, %v1950
        %v2207 = vadd.f32 %v2079, %v1951
        %v2208 = vadd.f32 %v2080, %v1952
        %v2209 = vadd.f32 %v2081, %v1953
        %v2210 = vadd.f32 %v2082, %v1954
        %v2211 = vadd.f32 %v2083, %v1955
        %v2212 = vadd.f32 %v2084, %v1956
        %v2213 = vadd.f32 %v2085, %v1957
        %v2214 = vadd.f32 %v2086, %v1958
        %v2215 = vadd.f32 %v2087, %v1959
        %v2216 = vadd.f32 %v2088, %v1960
        %v2217 = vadd.f32 %v2089, %v1961
        %v2218 = vadd.f32 %v2090, %v1962
        %v2219 = vadd.f32 %v2091, %v1963
        %v2220 = vadd.f32 %v2092, %v1964
        %v2221 = vadd.f32 %v2093, %v1965
        %v2222 = vadd.f32 %v2094, %v1966
        %v2223 = vadd.f32 %v2095, %v1967
        %v2224 = vadd.f32 %v2096, %v1968
        %v2225 = vadd.f32 %v2097, %v1969
        %v2226 = vadd.f32 %v2098, %v1970
        %v2227 = vadd.f32 %v2099, %v1971
        %v2228 = vadd.f32 %v2100, %v1972
        %v2229 = vadd.f32 %v2101, %v1973
        %v2230 = vadd.f32 %v2102, %v1974
        %v2231 = vadd.f32 %v2103, %v1975
        %v2232 = vadd.f32 %v2104, %v1976
        %v2233 = vadd.f32 %v2105, %v1977
        %v2234 = vadd.f32 %v2106, %v1978
        %v2235 = vadd.f32 %v2107, %v1979
        %v2236 = vadd.f32 %v2108, %v1980
        %v2237 = vadd.f32 %v2109, %v1981
        %v2238 = vadd.f32 %v2110, %v1982
        %v2239 = vadd.f32 %v2111, %v1983
        %v2240 = vadd.f32 %v2112, %v1984
        %v2241 = vadd.f32 %v2113, %v1985
        %v2242 = vadd.f32 %v2114, %v1986
        %v2243 = vadd.f32 %v2115, %v1987
        %v2244 = vadd.f32 %v2116, %v1988
        %v2245 = vadd.f32 %v2117, %v1989
        %v2246 = vadd.f32 %v2118, %v1990
        %v2247 = vadd.f32 %v2119, %v1991
        %v2248 = vadd.f32 %v2120, %v1992
        %v2249 = vadd.f32 %v2121, %v1993
        %v2250 = vadd.f32 %v2122, %v1994
        %v2251 = vadd.f32 %v2123, %v1995
        %v2252 = vadd.f32 %v2124, %v1996
        %v2253 = vadd.f32 %v2125, %v1997
        %v2254 = vadd.f32 %v2126, %v1998
        %v2255 = vadd.f32 %v2127, %v1999
        %v2256 = vadd.f32 %v2128, %v2000
        %v2257 = vadd.f32 %v2129, %v2001
        %v2258 = vadd.f32 %v2130, %v2002
        %v2259 = vadd.f32 %v2131, %v2003
        %v2260 = vadd.f32 %v2132, %v2004
        %v2261 = vadd.f32 %v2133, %v2005
        %v2262 = vadd.f32 %v2134, %v2006
        %v2263 = vadd.f32 %v2135, %v2007
        %v2264 = vadd.f32 %v2136, %v2008
        %v2265 = vadd.f32 %v2137, %v2009
        %v2266 = vadd.f32 %v2138, %v2010
        %v2267 = vadd.f32 %v2139, %v2011
        %v2268 = vadd.f32 %v2140, %v2012
        %v2269 = vadd.f32 %v2141, %v2013
        %v2270 = vadd.f32 %v2142, %v2014
        %v2271 = vpack.c.bf16 %v2145, %v2143
        %v2272 = vpack.c.bf16 %v2146, %v2144
        %v2273 = vpack.c.bf16 %v2149, %v2147
        %v2274 = vpack.c.bf16 %v2150, %v2148
        %v2275 = vpack.c.bf16 %v2153, %v2151
        %v2276 = vpack.c.bf16 %v2154, %v2152
        %v2277 = vpack.c.bf16 %v2157, %v2155
        %v2278 = vpack.c.bf16 %v2158, %v2156
        %v2279 = vpack.c.bf16 %v2161, %v2159
        %v2280 = vpack.c.bf16 %v2162, %v2160
        %v2281 = vpack.c.bf16 %v2165, %v2163
        %v2282 = vpack.c.bf16 %v2166, %v2164
        %v2283 = vpack.c.bf16 %v2169, %v2167
        %v2284 = vpack.c.bf16 %v2170, %v2168
        %v2285 = vpack.c.bf16 %v2173, %v2171
        %v2286 = vpack.c.bf16 %v2174, %v2172
        %v2287 = vpack.c.bf16 %v2177, %v2175
        %v2288 = vpack.c.bf16 %v2178, %v2176
        %v2289 = vpack.c.bf16 %v2181, %v2179
        %v2290 = vpack.c.bf16 %v2182, %v2180
        %v2291 = vpack.c.bf16 %v2185, %v2183
        %v2292 = vpack.c.bf16 %v2186, %v2184
        %v2293 = vpack.c.bf16 %v2189, %v2187
        %v2294 = vpack.c.bf16 %v2190, %v2188
        %v2295 = vpack.c.bf16 %v2193, %v2191
        %v2296 = vpack.c.bf16 %v2194, %v2192
        %v2297 = vpack.c.bf16 %v2197, %v2195
        %v2298 = vpack.c.bf16 %v2198, %v2196
        %v2299 = vpack.c.bf16 %v2201, %v2199
        %v2300 = vpack.c.bf16 %v2202, %v2200
        %v2301 = vpack.c.bf16 %v2205, %v2203
        %v2302 = vpack.c.bf16 %v2206, %v2204
        %v2303 = vpack.c.bf16 %v2209, %v2207
        %v2304 = vpack.c.bf16 %v2210, %v2208
        %v2305 = vpack.c.bf16 %v2213, %v2211
        %v2306 = vpack.c.bf16 %v2214, %v2212
        %v2307 = vpack.c.bf16 %v2217, %v2215
        %v2308 = vpack.c.bf16 %v2218, %v2216
        %v2309 = vpack.c.bf16 %v2221, %v2219
        %v2310 = vpack.c.bf16 %v2222, %v2220
        %v2311 = vpack.c.bf16 %v2225, %v2223
        %v2312 = vpack.c.bf16 %v2226, %v2224
        %v2313 = vpack.c.bf16 %v2229, %v2227
        %v2314 = vpack.c.bf16 %v2230, %v2228
        %v2315 = vpack.c.bf16 %v2233, %v2231
        %v2316 = vpack.c.bf16 %v2234, %v2232
        %v2317 = vpack.c.bf16 %v2237, %v2235
        %v2318 = vpack.c.bf16 %v2238, %v2236
        %v2319 = vpack.c.bf16 %v2241, %v2239
        %v2320 = vpack.c.bf16 %v2242, %v2240
        %v2321 = vpack.c.bf16 %v2245, %v2243
        %v2322 = vpack.c.bf16 %v2246, %v2244
        %v2323 = vpack.c.bf16 %v2249, %v2247
        %v2324 = vpack.c.bf16 %v2250, %v2248
        %v2325 = vpack.c.bf16 %v2253, %v2251
        %v2326 = vpack.c.bf16 %v2254, %v2252
        %v2327 = vpack.c.bf16 %v2257, %v2255
        %v2328 = vpack.c.bf16 %v2258, %v2256
        %v2329 = vpack.c.bf16 %v2261, %v2259
        %v2330 = vpack.c.bf16 %v2262, %v2260
        %v2331 = vpack.c.bf16 %v2265, %v2263
        %v2332 = vpack.c.bf16 %v2266, %v2264
        %v2333 = vpack.c.bf16 %v2269, %v2267
        %v2334 = vpack.c.bf16 %v2270, %v2268
        %v2399 = vunpack.c.l.b16 %v2271
        %v2400 = vunpack.c.l.b16 %v2272
        %v2401 = vunpack.c.h.b16 %v2271
        %v2402 = vunpack.c.h.b16 %v2272
        %v2403 = vunpack.c.l.b16 %v2273
        %v2404 = vunpack.c.l.b16 %v2274
        %v2405 = vunpack.c.h.b16 %v2273
        %v2406 = vunpack.c.h.b16 %v2274
        %v2407 = vunpack.c.l.b16 %v2275
        %v2408 = vunpack.c.l.b16 %v2276
        %v2409 = vunpack.c.h.b16 %v2275
        %v2410 = vunpack.c.h.b16 %v2276
        %v2411 = vunpack.c.l.b16 %v2277
        %v2412 = vunpack.c.l.b16 %v2278
        %v2413 = vunpack.c.h.b16 %v2277
        %v2414 = vunpack.c.h.b16 %v2278
        %v2415 = vunpack.c.l.b16 %v2279
        %v2416 = vunpack.c.l.b16 %v2280
        %v2417 = vunpack.c.h.b16 %v2279
        %v2418 = vunpack.c.h.b16 %v2280
        %v2419 = vunpack.c.l.b16 %v2281
        %v2420 = vunpack.c.l.b16 %v2282
        %v2421 = vunpack.c.h.b16 %v2281
        %v2422 = vunpack.c.h.b16 %v2282
        %v2423 = vunpack.c.l.b16 %v2283
        %v2424 = vunpack.c.l.b16 %v2284
        %v2425 = vunpack.c.h.b16 %v2283
        %v2426 = vunpack.c.h.b16 %v2284
        %v2427 = vunpack.c.l.b16 %v2285
        %v2428 = vunpack.c.l.b16 %v2286
        %v2429 = vunpack.c.h.b16 %v2285
        %v2430 = vunpack.c.h.b16 %v2286
        %v2431 = vunpack.c.l.b16 %v2287
        %v2432 = vunpack.c.l.b16 %v2288
        %v2433 = vunpack.c.h.b16 %v2287
        %v2434 = vunpack.c.h.b16 %v2288
        %v2435 = vunpack.c.l.b16 %v2289
        %v2436 = vunpack.c.l.b16 %v2290
        %v2437 = vunpack.c.h.b16 %v2289
        %v2438 = vunpack.c.h.b16 %v2290
        %v2439 = vunpack.c.l.b16 %v2291
        %v2440 = vunpack.c.l.b16 %v2292
        %v2441 = vunpack.c.h.b16 %v2291
        %v2442 = vunpack.c.h.b16 %v2292
        %v2443 = vunpack.c.l.b16 %v2293
        %v2444 = vunpack.c.l.b16 %v2294
        %v2445 = vunpack.c.h.b16 %v2293
        %v2446 = vunpack.c.h.b16 %v2294
        %v2447 = vunpack.c.l.b16 %v2295
        %v2448 = vunpack.c.l.b16 %v2296
        %v2449 = vunpack.c.h.b16 %v2295
        %v2450 = vunpack.c.h.b16 %v2296
        %v2451 = vunpack.c.l.b16 %v2297
        %v2452 = vunpack.c.l.b16 %v2298
        %v2453 = vunpack.c.h.b16 %v2297
        %v2454 = vunpack.c.h.b16 %v2298
        %v2455 = vunpack.c.l.b16 %v2299
        %v2456 = vunpack.c.l.b16 %v2300
        %v2457 = vunpack.c.h.b16 %v2299
        %v2458 = vunpack.c.h.b16 %v2300
        %v2459 = vunpack.c.l.b16 %v2301
        %v2460 = vunpack.c.l.b16 %v2302
        %v2461 = vunpack.c.h.b16 %v2301
        %v2462 = vunpack.c.h.b16 %v2302
        %v2463 = vunpack.c.l.b16 %v2303
        %v2464 = vunpack.c.l.b16 %v2304
        %v2465 = vunpack.c.h.b16 %v2303
        %v2466 = vunpack.c.h.b16 %v2304
        %v2467 = vunpack.c.l.b16 %v2305
        %v2468 = vunpack.c.l.b16 %v2306
        %v2469 = vunpack.c.h.b16 %v2305
        %v2470 = vunpack.c.h.b16 %v2306
        %v2471 = vunpack.c.l.b16 %v2307
        %v2472 = vunpack.c.l.b16 %v2308
        %v2473 = vunpack.c.h.b16 %v2307
        %v2474 = vunpack.c.h.b16 %v2308
        %v2475 = vunpack.c.l.b16 %v2309
        %v2476 = vunpack.c.l.b16 %v2310
        %v2477 = vunpack.c.h.b16 %v2309
        %v2478 = vunpack.c.h.b16 %v2310
        %v2479 = vunpack.c.l.b16 %v2311
        %v2480 = vunpack.c.l.b16 %v2312
        %v2481 = vunpack.c.h.b16 %v2311
        %v2482 = vunpack.c.h.b16 %v2312
        %v2483 = vunpack.c.l.b16 %v2313
        %v2484 = vunpack.c.l.b16 %v2314
        %v2485 = vunpack.c.h.b16 %v2313
        %v2486 = vunpack.c.h.b16 %v2314
        %v2487 = vunpack.c.l.b16 %v2315
        %v2488 = vunpack.c.l.b16 %v2316
        %v2489 = vunpack.c.h.b16 %v2315
        %v2490 = vunpack.c.h.b16 %v2316
        %v2491 = vunpack.c.l.b16 %v2317
        %v2492 = vunpack.c.l.b16 %v2318
        %v2493 = vunpack.c.h.b16 %v2317
        %v2494 = vunpack.c.h.b16 %v2318
        %v2495 = vunpack.c.l.b16 %v2319
        %v2496 = vunpack.c.l.b16 %v2320
        %v2497 = vunpack.c.h.b16 %v2319
        %v2498 = vunpack.c.h.b16 %v2320
        %v2499 = vunpack.c.l.b16 %v2321
        %v2500 = vunpack.c.l.b16 %v2322
        %v2501 = vunpack.c.h.b16 %v2321
        %v2502 = vunpack.c.h.b16 %v2322
        %v2503 = vunpack.c.l.b16 %v2323
        %v2504 = vunpack.c.l.b16 %v2324
        %v2505 = vunpack.c.h.b16 %v2323
        %v2506 = vunpack.c.h.b16 %v2324
        %v2507 = vunpack.c.l.b16 %v2325
        %v2508 = vunpack.c.l.b16 %v2326
        %v2509 = vunpack.c.h.b16 %v2325
        %v2510 = vunpack.c.h.b16 %v2326
        %v2511 = vunpack.c.l.b16 %v2327
        %v2512 = vunpack.c.l.b16 %v2328
        %v2513 = vunpack.c.h.b16 %v2327
        %v2514 = vunpack.c.h.b16 %v2328
        %v2515 = vunpack.c.l.b16 %v2329
        %v2516 = vunpack.c.l.b16 %v2330
        %v2517 = vunpack.c.h.b16 %v2329
        %v2518 = vunpack.c.h.b16 %v2330
        %v2519 = vunpack.c.l.b16 %v2331
        %v2520 = vunpack.c.l.b16 %v2332
        %v2521 = vunpack.c.h.b16 %v2331
        %v2522 = vunpack.c.h.b16 %v2332
        %v2523 = vunpack.c.l.b16 %v2333
        %v2524 = vunpack.c.l.b16 %v2334
        %v2525 = vunpack.c.h.b16 %v2333
        %v2526 = vunpack.c.h.b16 %v2334
        %v2527 = vpack.c.b16 %v2400, %v2399
        %v2528 = vpack.c.b16 %v2402, %v2401
        %v2529 = vpack.c.b16 %v2404, %v2403
        %v2530 = vpack.c.b16 %v2406, %v2405
        %v2531 = vpack.c.b16 %v2408, %v2407
        %v2532 = vpack.c.b16 %v2410, %v2409
        %v2533 = vpack.c.b16 %v2412, %v2411
        %v2534 = vpack.c.b16 %v2414, %v2413
        %v2535 = vpack.c.b16 %v2416, %v2415
        %v2536 = vpack.c.b16 %v2418, %v2417
        %v2537 = vpack.c.b16 %v2420, %v2419
        %v2538 = vpack.c.b16 %v2422, %v2421
        %v2539 = vpack.c.b16 %v2424, %v2423
        %v2540 = vpack.c.b16 %v2426, %v2425
        %v2541 = vpack.c.b16 %v2428, %v2427
        %v2542 = vpack.c.b16 %v2430, %v2429
        %v2543 = vpack.c.b16 %v2432, %v2431
        %v2544 = vpack.c.b16 %v2434, %v2433
        %v2545 = vpack.c.b16 %v2436, %v2435
        %v2546 = vpack.c.b16 %v2438, %v2437
        %v2547 = vpack.c.b16 %v2440, %v2439
        %v2548 = vpack.c.b16 %v2442, %v2441
        %v2549 = vpack.c.b16 %v2444, %v2443
        %v2550 = vpack.c.b16 %v2446, %v2445
        %v2551 = vpack.c.b16 %v2448, %v2447
        %v2552 = vpack.c.b16 %v2450, %v2449
        %v2553 = vpack.c.b16 %v2452, %v2451
        %v2554 = vpack.c.b16 %v2454, %v2453
        %v2555 = vpack.c.b16 %v2456, %v2455
        %v2556 = vpack.c.b16 %v2458, %v2457
        %v2557 = vpack.c.b16 %v2460, %v2459
        %v2558 = vpack.c.b16 %v2462, %v2461
        %v2559 = vpack.c.b16 %v2464, %v2463
        %v2560 = vpack.c.b16 %v2466, %v2465
        %v2561 = vpack.c.b16 %v2468, %v2467
        %v2562 = vpack.c.b16 %v2470, %v2469
        %v2563 = vpack.c.b16 %v2472, %v2471
        %v2564 = vpack.c.b16 %v2474, %v2473
        %v2565 = vpack.c.b16 %v2476, %v2475
        %v2566 = vpack.c.b16 %v2478, %v2477
        %v2567 = vpack.c.b16 %v2480, %v2479
        %v2568 = vpack.c.b16 %v2482, %v2481
        %v2569 = vpack.c.b16 %v2484, %v2483
        %v2570 = vpack.c.b16 %v2486, %v2485
        %v2571 = vpack.c.b16 %v2488, %v2487
        %v2572 = vpack.c.b16 %v2490, %v2489
        %v2573 = vpack.c.b16 %v2492, %v2491
        %v2574 = vpack.c.b16 %v2494, %v2493
        %v2575 = vpack.c.b16 %v2496, %v2495
        %v2576 = vpack.c.b16 %v2498, %v2497
        %v2577 = vpack.c.b16 %v2500, %v2499
        %v2578 = vpack.c.b16 %v2502, %v2501
        %v2579 = vpack.c.b16 %v2504, %v2503
        %v2580 = vpack.c.b16 %v2506, %v2505
        %v2581 = vpack.c.b16 %v2508, %v2507
        %v2582 = vpack.c.b16 %v2510, %v2509
        %v2583 = vpack.c.b16 %v2512, %v2511
        %v2584 = vpack.c.b16 %v2514, %v2513
        %v2585 = vpack.c.b16 %v2516, %v2515
        %v2586 = vpack.c.b16 %v2518, %v2517
        %v2587 = vpack.c.b16 %v2520, %v2519
        %v2588 = vpack.c.b16 %v2522, %v2521
        %v2589 = vpack.c.b16 %v2524, %v2523
        %v2590 = vpack.c.b16 %v2526, %v2525
        %2655 = vst [vmem:[%s218] sm:$0xff] %v2527
        %2656 = vst [vmem:[%s218 + $0x8] sm:$0xff] %v2528
        %2657 = vst [vmem:[%s218 + $0x10] sm:$0xff] %v2529
        %2658 = vst [vmem:[%s218 + $0x18] sm:$0xff] %v2530
        %2659 = vst [vmem:[%s218 + $0x20] sm:$0xff] %v2531
        %2660 = vst [vmem:[%s218 + $0x28] sm:$0xff] %v2532
        %2661 = vst [vmem:[%s218 + $0x30] sm:$0xff] %v2533
        %2662 = vst [vmem:[%s218 + $0x38] sm:$0xff] %v2534
        %2663 = vst [vmem:[%s218 + $0x40] sm:$0xff] %v2535
        %2664 = vst [vmem:[%s218 + $0x48] sm:$0xff] %v2536
        %2665 = vst [vmem:[%s218 + $0x50] sm:$0xff] %v2537
        %2666 = vst [vmem:[%s218 + $0x58] sm:$0xff] %v2538
        %2667 = vst [vmem:[%s218 + $0x60] sm:$0xff] %v2539
        %2668 = vst [vmem:[%s218 + $0x68] sm:$0xff] %v2540
        %2669 = vst [vmem:[%s218 + $0x70] sm:$0xff] %v2541
        %2670 = vst [vmem:[%s218 + $0x78] sm:$0xff] %v2542
        %2671 = vst [vmem:[%s218 + $0x80] sm:$0xff] %v2543
        %2672 = vst [vmem:[%s218 + $0x88] sm:$0xff] %v2544
        %2673 = vst [vmem:[%s218 + $0x90] sm:$0xff] %v2545
        %2674 = vst [vmem:[%s218 + $0x98] sm:$0xff] %v2546
        %2675 = vst [vmem:[%s218 + $0xa0] sm:$0xff] %v2547
        %2676 = vst [vmem:[%s218 + $0xa8] sm:$0xff] %v2548
        %2677 = vst [vmem:[%s218 + $0xb0] sm:$0xff] %v2549
        %2678 = vst [vmem:[%s218 + $0xb8] sm:$0xff] %v2550
        %2679 = vst [vmem:[%s218 + $0xc0] sm:$0xff] %v2551
        %2680 = vst [vmem:[%s218 + $0xc8] sm:$0xff] %v2552
        %2681 = vst [vmem:[%s218 + $0xd0] sm:$0xff] %v2553
        %2682 = vst [vmem:[%s218 + $0xd8] sm:$0xff] %v2554
        %2683 = vst [vmem:[%s218 + $0xe0] sm:$0xff] %v2555
        %2684 = vst [vmem:[%s218 + $0xe8] sm:$0xff] %v2556
        %2685 = vst [vmem:[%s218 + $0xf0] sm:$0xff] %v2557
        %2686 = vst [vmem:[%s218 + $0xf8] sm:$0xff] %v2558
        %2687 = vst [vmem:[%s218 + $0x100] sm:$0xff] %v2559
        %2688 = vst [vmem:[%s218 + $0x108] sm:$0xff] %v2560
        %2689 = vst [vmem:[%s218 + $0x110] sm:$0xff] %v2561
        %2690 = vst [vmem:[%s218 + $0x118] sm:$0xff] %v2562
        %2691 = vst [vmem:[%s218 + $0x120] sm:$0xff] %v2563
        %2692 = vst [vmem:[%s218 + $0x128] sm:$0xff] %v2564
        %2693 = vst [vmem:[%s218 + $0x130] sm:$0xff] %v2565
        %2694 = vst [vmem:[%s218 + $0x138] sm:$0xff] %v2566
        %2695 = vst [vmem:[%s218 + $0x140] sm:$0xff] %v2567
        %2696 = vst [vmem:[%s218 + $0x148] sm:$0xff] %v2568
        %2697 = vst [vmem:[%s218 + $0x150] sm:$0xff] %v2569
        %2698 = vst [vmem:[%s218 + $0x158] sm:$0xff] %v2570
        %2699 = vst [vmem:[%s218 + $0x160] sm:$0xff] %v2571
        %2700 = vst [vmem:[%s218 + $0x168] sm:$0xff] %v2572
        %2701 = vst [vmem:[%s218 + $0x170] sm:$0xff] %v2573
        %2702 = vst [vmem:[%s218 + $0x178] sm:$0xff] %v2574
        %2703 = vst [vmem:[%s218 + $0x180] sm:$0xff] %v2575
        %2704 = vst [vmem:[%s218 + $0x188] sm:$0xff] %v2576
        %2705 = vst [vmem:[%s218 + $0x190] sm:$0xff] %v2577
        %2706 = vst [vmem:[%s218 + $0x198] sm:$0xff] %v2578
        %2707 = vst [vmem:[%s218 + $0x1a0] sm:$0xff] %v2579
        %2708 = vst [vmem:[%s218 + $0x1a8] sm:$0xff] %v2580
        %2709 = vst [vmem:[%s218 + $0x1b0] sm:$0xff] %v2581
        %2710 = vst [vmem:[%s218 + $0x1b8] sm:$0xff] %v2582
        %2711 = vst [vmem:[%s218 + $0x1c0] sm:$0xff] %v2583
        %2712 = vst [vmem:[%s218 + $0x1c8] sm:$0xff] %v2584
        %2713 = vst [vmem:[%s218 + $0x1d0] sm:$0xff] %v2585
        %2714 = vst [vmem:[%s218 + $0x1d8] sm:$0xff] %v2586
        %2715 = vst [vmem:[%s218 + $0x1e0] sm:$0xff] %v2587
        %2716 = vst [vmem:[%s218 + $0x1e8] sm:$0xff] %v2588
        %2717 = vst [vmem:[%s218 + $0x1f0] sm:$0xff] %v2589
        %2718 = vst [vmem:[%s218 + $0x1f8] sm:$0xff] %v2590
        %s2719 = sand.u32 %s97, 1
        %s2720 = scalar_lea.sflag [#allocation4], %s2719
        %s2721 = sand.u32 %s97, 1
        %s2722 = smul.addr %s2721, 512
        %s2723 = scalar_lea.vmem [#allocation8], %s2722
        // Predicated region
        $region45: #{tpu_custom_call.1} parent=31 // pred_check
          %p2724 = pneg %p107
        $region46: #{tpu_custom_call.1} parent=31 // pred_check_branch
          %2726 = sbr.rel (%p2724) target = $region48
        $region47: #{tpu_custom_call.1} parent=31 // pred_region
          %s2727 = smul.u32 64, %s21
          %s2729 = ssub.s32 8192, 8192
          %2730 = vsyncadd %s2720, %s2729
          %s2731 = smul.addr %s2727, 2
          %s2732 = smul.addr %s2731, 64
          %s2733 = scalar_lea.hbm %s3, %s2732
          %s2734 = sshll.u32 %s2723, 4
          %s2735 = int_to_ptr.vmem [resolvable:$true] %s2734
          %2740 = dma.vmem_to_hbm [thread:$0]  %s2735, 8192, %s2733, %s2720, 128, 128, 8
        $region48: #{tpu_custom_call.1} parent=31 // pred_fallthru
          _
      $region32: #{tpu_custom_call.1} parent=5 // pred_fallthru
        _
      %p2741 = scmp.le.s32.totalorder 2, %s16
      // Predicated region
      $region49: #{tpu_custom_call.1} parent=5 // pred_check
        %p2742 = pneg %p2741
      $region50: #{tpu_custom_call.1} parent=5 // pred_check_branch
        %2744 = sbr.rel (%p2742) target = $region52
      $region51: #{tpu_custom_call.1} parent=5 // pred_region
        %s2745 = ssub.s32 %s16, 2
        // Predicated region
        $region53: #{tpu_custom_call.1} parent=51 // pred_check
          %p2746 = pneg %p113
        $region54: #{tpu_custom_call.1} parent=51 // pred_check_branch
          %2748 = sbr.rel (%p2746) target = $region56
        $region55: #{tpu_custom_call.1} parent=51 // pred_region
          %s2749 = sand.u32 %s98, 1
          %s2750 = scalar_lea.sflag [#allocation4], %s2749
          %s2751 = sand.u32 %s98, 1
          %s2752 = smul.addr %s2751, 512
          %s2753 = scalar_lea.vmem [#allocation8], %s2752
          %2754 = dma.done %s2750, 8192
        $region56: #{tpu_custom_call.1} parent=51 // pred_fallthru
          _
      $region52: #{tpu_custom_call.1} parent=5 // pred_fallthru
        _
    $region6: #{tpu_custom_call.1} parent=1 // loop_footer
      %s20 = sadd.s32 1, %s16
    $region7: #{tpu_custom_call.1} parent=1 // loop_footer_branch
      %15 = sbr.rel target = $region3
    $region8: #{tpu_custom_call.1} parent=1 // loop_exit
      _
    %2755 = vsyncpa [#allocation3], 1
    %s2756 = scalar_lea.sflag [#allocation3], 1
    %2757 = vsyncpa %s2756, 1
    %2758 = vsyncpa [#allocation6], 1
    %2759 = vsyncpa [#allocation4], 1
    %s2760 = scalar_lea.sflag [#allocation4], 1
    %2761 = vsyncpa %s2760, 1

</llo_original>
